<compile_context>
chip_gen: v7x
topology: tpu7x:2x2x1
jax: 0.10.0
libtpu: 0.0.40
codegen_flags: <defaults>
</compile_context>

<pallas_src>
import functools
import math

import jax
import jax.numpy as jnp
from jax.experimental import pallas as pl
from jax.experimental.pallas import tpu as pltpu


# ----------------------------------------------------------------------------- kernel
def _strategy_attention_kernel(
    box_ref,       # (1, Bb*N, Fb)   box ++ precedence features, batches flattened into rows
    bvm_ref,       # (1, Bb*N, 1)    box_valid_mask column (zeroes invalid box vectors)
    ems_ref,       # (1, C*Bb*M, E)  per-corner EMS features, corner-major rows
    mask_ref,      # (Bb, M, N)      ems_to_box_mask * box_valid_mask
    emsm_ref,      # (1, Bb*M, 1)    ems_mask column (zeroes invalid EMS rows)
    w_obj_ref, b_obj_ref,            # (Fb, H), (1, H)
    w_sp_ref, b_sp_ref,              # (E,  H), (1, H)
    wq_ref,                          # (H, H)
    w_kv_ref,                        # (H, 2H)  fused K/V projection
    wo_ref, bo_ref,                  # (H, Hp), (1, Hp)  output projection, zero-padded lanes
    out_ref,       # (1, Bb*M, Hp)
    *, Bb, N, M, C, H,
):
    f32 = jnp.float32
    scale = 1.0 / math.sqrt(H)

    # ----- ObjectEncoder: one [Bb*N, Fb] x [Fb, H] matmul, ReLU, zero invalid boxes -----
    box2d = box_ref[0]                                                        # (Bb*N, Fb)
    box_vecs = jnp.maximum(
        jnp.dot(box2d, w_obj_ref[...], preferred_element_type=f32) + b_obj_ref[...], 0.0)
    box_vecs = box_vecs * bvm_ref[0]                                          # (Bb*N, H)

    # ----- SpaceEncoder: one [C*Bb*M, E] x [E, H] matmul, ReLU, mean over corners -----
    ems2d = ems_ref[0]                                                        # (C*Bb*M, E)
    h_sp = jnp.maximum(
        jnp.dot(ems2d, w_sp_ref[...], preferred_element_type=f32) + b_sp_ref[...], 0.0)
    # corner-major rows: corner c occupies the contiguous slice [c*Bb*M, (c+1)*Bb*M)
    acc = h_sp[0:Bb * M, :]
    for c in range(1, C):                                                     # C-1 VPU adds
        acc = acc + h_sp[c * Bb * M:(c + 1) * Bb * M, :]
    ems_vecs = acc * (1.0 / C)                                                # (Bb*M, H)

    # ----- CrossTransformer: fused K/V projection, batched masked attention -----
    q2 = jnp.dot(ems_vecs, wq_ref[...], preferred_element_type=f32)           # (Bb*M, H)
    kv = jnp.dot(box_vecs, w_kv_ref[...], preferred_element_type=f32)         # (Bb*N, 2H)

    q = q2.reshape(Bb, M, H)
    k = kv[:, :H].reshape(Bb, N, H)
    v = kv[:, H:].reshape(Bb, N, H)

    scores = jnp.einsum("bmh,bnh->bmn", q, k, preferred_element_type=f32) * scale
    scores = jnp.where(mask_ref[...] > 0.5, scores, jnp.float32(-1e9))        # (Bb, M, N)

    m = jnp.max(scores, axis=-1, keepdims=True)
    e = jnp.exp(scores - m)
    attn = e * pl.reciprocal(jnp.sum(e, axis=-1, keepdims=True), approx=True)

    ctx = jnp.einsum("bmn,bnh->bmh", attn, v, preferred_element_type=f32)     # (Bb, M, H)

    out = (jnp.dot(ctx.reshape(Bb * M, H), wo_ref[...], preferred_element_type=f32)
           + bo_ref[...])                                                     # (Bb*M, Hp)
    out = out * emsm_ref[0]                                                   # zero invalid EMS
    out_ref[0] = out.astype(out_ref.dtype)                                    # lane-dense store


# ----------------------------------------------------------------------------- wrapper
def _choose_batch_block(B, N, M, C):
    rows = max(N, M * C)
    bb = max(1, 128 // rows)           # aim for ~128 sublanes in the flattened encoder matmuls
    if B >= 2:
        bb = min(bb, -(-B // 2))       # keep >= 2 grid steps so both v7x TensorCores get work
    return max(1, min(bb, B))


def _pad_batch(x, bpad):
    b = x.shape[0]
    if bpad == b:
        return x
    return jnp.pad(x, [(0, bpad - b)] + [(0, 0)] * (x.ndim - 1))


def strategy_attention(box, precedences, ems, ems_mask, ems_to_box_mask,
                       box_valid_mask, params):
    """box [B,N,box_dim], precedences [B,N,prec_dim], ems [B,M,C,ems_dim],
    ems_mask [B,M], ems_to_box_mask [B,M,N], box_valid_mask [B,N] -> [B,M,H]."""
    f32 = jnp.float32
    B, N, _ = box.shape
    _, M, C, E = ems.shape
    H = params["wq"].shape[0]

    Bb = _choose_batch_block(B, N, M, C)
    G = -(-B // Bb)
    Bpad = G * Bb

    # ---- glue / layout prep (wrapper-side XLA, no heavy compute) ----
    box_feat = jnp.concatenate([box, precedences], axis=-1).astype(f32)        # [B, N, Fb]
    Fb = box_feat.shape[-1]
    box_feat = _pad_batch(box_feat, Bpad).reshape(G, Bb * N, Fb)

    bvm = _pad_batch(box_valid_mask.astype(f32), Bpad)                         # [Bpad, N]
    bvm_col = bvm.reshape(G, Bb * N, 1)

    ems_p = _pad_batch(ems.astype(f32), Bpad)                                  # [Bpad, M, C, E]
    ems_cm = (ems_p.reshape(G, Bb, M, C, E)
                   .transpose(0, 3, 1, 2, 4)                                   # [G, C, Bb, M, E]
                   .reshape(G, C * Bb * M, E))

    mask = _pad_batch(ems_to_box_mask.astype(f32), Bpad) * bvm[:, None, :]     # [Bpad, M, N]
    ems_mask2 = _pad_batch(ems_mask.astype(f32), Bpad).reshape(G, Bb * M, 1)

    # ---- weight packing: fuse K/V, pad output projection to 128 lanes (zeros) ----
    w_kv = jnp.concatenate([params["wk"], params["wv"]], axis=1).astype(f32)   # [H, 2H]
    Hp = max(128, ((H + 127) // 128) * 128)
    wo_p = jnp.pad(params["wo"].astype(f32), ((0, 0), (0, Hp - H)))
    bo_p = jnp.pad(params["bo"].astype(f32), ((0, 0), (0, Hp - H)))

    step3 = lambda shape: pl.BlockSpec(shape, lambda g: (g, 0, 0))
    whole = lambda arr: pl.BlockSpec(arr.shape, lambda g: (0, 0))

    kernel = functools.partial(_strategy_attention_kernel, Bb=Bb, N=N, M=M, C=C, H=H)

    out = pl.pallas_call(
        kernel,
        out_shape=jax.ShapeDtypeStruct((G, Bb * M, Hp), f32),
        grid=(G,),
        in_specs=[
            step3((1, Bb * N, Fb)),                 # box_feat
            step3((1, Bb * N, 1)),                  # box_valid_mask (column)
            step3((1, C * Bb * M, E)),              # EMS corners (corner-major)
            pl.BlockSpec((Bb, M, N), lambda g: (g, 0, 0)),  # combined attention mask
            step3((1, Bb * M, 1)),                  # ems_mask (column)
            whole(params["w_obj"]), whole(params["b_obj"]),
            whole(params["w_sp"]), whole(params["b_sp"]),
            whole(params["wq"]), whole(w_kv),
            whole(wo_p), whole(bo_p),
        ],
        out_specs=step3((1, Bb * M, Hp)),
        compiler_params=pltpu.CompilerParams(dimension_semantics=("parallel",)),
    )(box_feat, bvm_col, ems_cm, mask, ems_mask2,
      params["w_obj"].astype(f32), params["b_obj"].astype(f32),
      params["w_sp"].astype(f32), params["b_sp"].astype(f32),
      params["wq"].astype(f32), w_kv, wo_p, bo_p)

    return out.reshape(Bpad, M, Hp)[:B, :, :H]


# ----------------------------------------------------------------------------- reference (pure jnp)
def strategy_attention_ref(box, precedences, ems, ems_mask, ems_to_box_mask,
                           box_valid_mask, params):
    B, N, _ = box.shape
    _, M, C, E = ems.shape
    H = params["wq"].shape[0]
    feat = jnp.concatenate([box, precedences], axis=-1)
    box_vecs = jnp.maximum(feat @ params["w_obj"] + params["b_obj"], 0.0)
    box_vecs = box_vecs * box_valid_mask[..., None]
    h_sp = jnp.maximum(ems.reshape(B, M * C, E) @ params["w_sp"] + params["b_sp"], 0.0)
    ems_vecs = h_sp.reshape(B, M, C, H).mean(axis=2)
    q = ems_vecs @ params["wq"]; k = box_vecs @ params["wk"]; v = box_vecs @ params["wv"]
    scores = jnp.einsum("bmh,bnh->bmn", q, k) / math.sqrt(H)
    mask = ems_to_box_mask * box_valid_mask[:, None, :]
    scores = jnp.where(mask > 0.5, scores, -1e9)
    attn = jax.nn.softmax(scores, axis=-1)
    out = jnp.einsum("bmn,bnh->bmh", attn, v) @ params["wo"] + params["bo"]
    return out * ems_mask[..., None]


# ----------------------------------------------------------------------------- main
if __name__ == "__main__":
    # B=5 exercises both batch folding (Bb=3 per grid step) and batch padding (Bpad=6).
    B, N, M = 5, 8, 8
    box_dim, prec_dim, ems_dim, corner_num, hidden = 6, 8, 6, 4, 32
    Fb = box_dim + prec_dim

    key = jax.random.PRNGKey(0)
    ks = jax.random.split(key, 16)

    def lin(k, fan_in, shape):
        return jax.random.uniform(k, shape, jnp.float32,
                                  -1.0 / math.sqrt(fan_in), 1.0 / math.sqrt(fan_in))

    params = {
        "w_obj": lin(ks[0], Fb, (Fb, hidden)),           "b_obj": lin(ks[1], Fb, (1, hidden)),
        "w_sp":  lin(ks[2], ems_dim, (ems_dim, hidden)), "b_sp":  lin(ks[3], ems_dim, (1, hidden)),
        "wq": lin(ks[4], hidden, (hidden, hidden)),
        "wk": lin(ks[5], hidden, (hidden, hidden)),
        "wv": lin(ks[6], hidden, (hidden, hidden)),
        "wo": lin(ks[7], hidden, (hidden, hidden)),      "bo": lin(ks[8], hidden, (1, hidden)),
    }

    box = jax.random.normal(ks[9], (B, N, box_dim), jnp.float32)
    precedences = jax.random.normal(ks[10], (B, N, prec_dim), jnp.float32)
    ems = jax.random.normal(ks[11], (B, M, corner_num, ems_dim), jnp.float32)
    ems_mask = jax.random.bernoulli(ks[12], 0.8, (B, M)).astype(jnp.float32).at[:, 0].set(1.0)
    box_valid_mask = jax.random.bernoulli(ks[13], 0.8, (B, N)).astype(jnp.float32).at[:, 0].set(1.0)
    ems_to_box_mask = (jax.random.bernoulli(ks[14], 0.8, (B, M, N))
                       .astype(jnp.float32).at[:, :, 0].set(1.0))

    out = strategy_attention(box, precedences, ems, ems_mask, ems_to_box_mask,
                             box_valid_mask, params)
    out = jax.block_until_ready(out)

    ref = strategy_attention_ref(box, precedences, ems, ems_mask, ems_to_box_mask,
                                 box_valid_mask, params)
    assert out.shape == (B, M, hidden)
    # Tolerance relaxed slightly vs. 1e-4 because the softmax denominator uses the
    # EUP approximate reciprocal (pl.reciprocal(approx=True)).
    assert jnp.allclose(out, ref, atol=5e-3, rtol=5e-3), "Pallas output mismatch vs jnp reference"
    print("KERNEL_OK")
</pallas_src>

<mosaic_0001>
module attributes {stable_mosaic.version = 11 : i64} {
  func.func @_strategy_attention_kernel(%arg0: i32, %arg1: memref<1x24x14xf32, #tpu.memory_space<vmem>>, %arg2: memref<1x24x1xf32, #tpu.memory_space<vmem>>, %arg3: memref<1x96x6xf32, #tpu.memory_space<vmem>>, %arg4: memref<3x8x8xf32, #tpu.memory_space<vmem>>, %arg5: memref<1x24x1xf32, #tpu.memory_space<vmem>>, %arg6: memref<14x32xf32, #tpu.memory_space<vmem>>, %arg7: memref<1x32xf32, #tpu.memory_space<vmem>>, %arg8: memref<6x32xf32, #tpu.memory_space<vmem>>, %arg9: memref<1x32xf32, #tpu.memory_space<vmem>>, %arg10: memref<32x32xf32, #tpu.memory_space<vmem>>, %arg11: memref<32x64xf32, #tpu.memory_space<vmem>>, %arg12: memref<32x128xf32, #tpu.memory_space<vmem>>, %arg13: memref<1x128xf32, #tpu.memory_space<vmem>>, %arg14: memref<1x24x128xf32, #tpu.memory_space<vmem>>) attributes {dimension_semantics = [#tpu.dimension_semantics<parallel>], iteration_bounds = array<i64: 2>, scalar_prefetch = 0 : i64, scratch_operands = 0 : i64, tpu.core_type = #tpu.core_type<tc>, window_params = [{transform_indices = @transform_0, window_bounds = array<i64: 1, 24, 14>}, {transform_indices = @transform_1, window_bounds = array<i64: 1, 24, 1>}, {transform_indices = @transform_2, window_bounds = array<i64: 1, 96, 6>}, {transform_indices = @transform_3, window_bounds = array<i64: 3, 8, 8>}, {transform_indices = @transform_4, window_bounds = array<i64: 1, 24, 1>}, {pipeline_mode = #tpu.pipeline_mode<synchronous>, transform_indices = @transform_5, window_bounds = array<i64: 14, 32>}, {pipeline_mode = #tpu.pipeline_mode<synchronous>, transform_indices = @transform_6, window_bounds = array<i64: 1, 32>}, {pipeline_mode = #tpu.pipeline_mode<synchronous>, transform_indices = @transform_7, window_bounds = array<i64: 6, 32>}, {pipeline_mode = #tpu.pipeline_mode<synchronous>, transform_indices = @transform_8, window_bounds = array<i64: 1, 32>}, {pipeline_mode = #tpu.pipeline_mode<synchronous>, transform_indices = @transform_9, window_bounds = array<i64: 32, 32>}, {pipeline_mode = #tpu.pipeline_mode<synchronous>, transform_indices = @transform_10, window_bounds = array<i64: 32, 64>}, {pipeline_mode = #tpu.pipeline_mode<synchronous>, transform_indices = @transform_11, window_bounds = array<i64: 32, 128>}, {pipeline_mode = #tpu.pipeline_mode<synchronous>, transform_indices = @transform_12, window_bounds = array<i64: 1, 128>}, {transform_indices = @transform_13, window_bounds = array<i64: 1, 24, 128>}]} {
    %c0 = arith.constant 0 : index
    %c0_0 = arith.constant 0 : index
    %c0_1 = arith.constant 0 : index
    %0 = vector.load %arg1[%c0, %c0_0, %c0_1] : memref<1x24x14xf32, #tpu.memory_space<vmem>>, vector<1x24x14xf32>
    %1 = vector.shape_cast %0 : vector<1x24x14xf32> to vector<24x14xf32>
    %c0_2 = arith.constant 0 : index
    %c0_3 = arith.constant 0 : index
    %2 = vector.load %arg6[%c0_2, %c0_3] : memref<14x32xf32, #tpu.memory_space<vmem>>, vector<14x32xf32>
    %cst = arith.constant dense<0.000000e+00> : vector<24x32xf32>
    %3 = tpu.matmul %1, %2, %cst {dimension_numbers = #tpu.dot_dimension_numbers<[1], [0], [0], [1], [0, 0, 1, 1], [], []>} : vector<24x14xf32>, vector<14x32xf32>, vector<24x32xf32> -> vector<24x32xf32>
    %c0_4 = arith.constant 0 : index
    %c0_5 = arith.constant 0 : index
    %4 = vector.load %arg7[%c0_4, %c0_5] : memref<1x32xf32, #tpu.memory_space<vmem>>, vector<1x32xf32>
    %5 = vector.broadcast %4 : vector<1x32xf32> to vector<24x32xf32>
    %6 = arith.addf %3, %5 : vector<24x32xf32>
    %cst_6 = arith.constant 0.000000e+00 : f32
    %7 = vector.broadcast %cst_6 : f32 to vector<24x32xf32>
    %8 = arith.maximumf %6, %7 : vector<24x32xf32>
    %c0_7 = arith.constant 0 : index
    %c0_8 = arith.constant 0 : index
    %c0_9 = arith.constant 0 : index
    %9 = vector.load %arg2[%c0_7, %c0_8, %c0_9] : memref<1x24x1xf32, #tpu.memory_space<vmem>>, vector<1x24x1xf32>
    %10 = vector.shape_cast %9 : vector<1x24x1xf32> to vector<24x1xf32>
    %11 = vector.broadcast %10 : vector<24x1xf32> to vector<24x32xf32>
    %12 = arith.mulf %8, %11 : vector<24x32xf32>
    %c0_10 = arith.constant 0 : index
    %c0_11 = arith.constant 0 : index
    %c0_12 = arith.constant 0 : index
    %13 = vector.load %arg3[%c0_10, %c0_11, %c0_12] : memref<1x96x6xf32, #tpu.memory_space<vmem>>, vector<1x96x6xf32>
    %14 = vector.shape_cast %13 : vector<1x96x6xf32> to vector<96x6xf32>
    %c0_13 = arith.constant 0 : index
    %c0_14 = arith.constant 0 : index
    %15 = vector.load %arg8[%c0_13, %c0_14] : memref<6x32xf32, #tpu.memory_space<vmem>>, vector<6x32xf32>
    %cst_15 = arith.constant dense<0.000000e+00> : vector<96x32xf32>
    %16 = tpu.matmul %14, %15, %cst_15 {dimension_numbers = #tpu.dot_dimension_numbers<[1], [0], [0], [1], [0, 0, 1, 1], [], []>} : vector<96x6xf32>, vector<6x32xf32>, vector<96x32xf32> -> vector<96x32xf32>
    %c0_16 = arith.constant 0 : index
    %c0_17 = arith.constant 0 : index
    %17 = vector.load %arg9[%c0_16, %c0_17] : memref<1x32xf32, #tpu.memory_space<vmem>>, vector<1x32xf32>
    %18 = vector.broadcast %17 : vector<1x32xf32> to vector<96x32xf32>
    %19 = arith.addf %16, %18 : vector<96x32xf32>
    %cst_18 = arith.constant 0.000000e+00 : f32
    %20 = vector.broadcast %cst_18 : f32 to vector<96x32xf32>
    %21 = arith.maximumf %19, %20 : vector<96x32xf32>
    %22 = vector.extract_strided_slice %21 {offsets = [0, 0], sizes = [24, 32], strides = [1, 1]} : vector<96x32xf32> to vector<24x32xf32>
    %23 = vector.extract_strided_slice %21 {offsets = [24, 0], sizes = [24, 32], strides = [1, 1]} : vector<96x32xf32> to vector<24x32xf32>
    %24 = arith.addf %22, %23 : vector<24x32xf32>
    %25 = vector.extract_strided_slice %21 {offsets = [48, 0], sizes = [24, 32], strides = [1, 1]} : vector<96x32xf32> to vector<24x32xf32>
    %26 = arith.addf %24, %25 : vector<24x32xf32>
    %27 = vector.extract_strided_slice %21 {offsets = [72, 0], sizes = [24, 32], strides = [1, 1]} : vector<96x32xf32> to vector<24x32xf32>
    %28 = arith.addf %26, %27 : vector<24x32xf32>
    %cst_19 = arith.constant 2.500000e-01 : f32
    %29 = vector.broadcast %cst_19 : f32 to vector<24x32xf32>
    %30 = arith.mulf %28, %29 : vector<24x32xf32>
    %c0_20 = arith.constant 0 : index
    %c0_21 = arith.constant 0 : index
    %31 = vector.load %arg10[%c0_20, %c0_21] : memref<32x32xf32, #tpu.memory_space<vmem>>, vector<32x32xf32>
    %cst_22 = arith.constant dense<0.000000e+00> : vector<24x32xf32>
    %32 = tpu.matmul %30, %31, %cst_22 {dimension_numbers = #tpu.dot_dimension_numbers<[1], [0], [0], [1], [0, 0, 1, 1], [], []>} : vector<24x32xf32>, vector<32x32xf32>, vector<24x32xf32> -> vector<24x32xf32>
    %c0_23 = arith.constant 0 : index
    %c0_24 = arith.constant 0 : index
    %33 = vector.load %arg11[%c0_23, %c0_24] : memref<32x64xf32, #tpu.memory_space<vmem>>, vector<32x64xf32>
    %cst_25 = arith.constant dense<0.000000e+00> : vector<24x64xf32>
    %34 = tpu.matmul %12, %33, %cst_25 {dimension_numbers = #tpu.dot_dimension_numbers<[1], [0], [0], [1], [0, 0, 1, 1], [], []>} : vector<24x32xf32>, vector<32x64xf32>, vector<24x64xf32> -> vector<24x64xf32>
    %35 = vector.shape_cast %32 : vector<24x32xf32> to vector<3x8x32xf32>
    %36 = vector.extract_strided_slice %34 {offsets = [0, 0], sizes = [24, 32], strides = [1, 1]} : vector<24x64xf32> to vector<24x32xf32>
    %37 = vector.shape_cast %36 : vector<24x32xf32> to vector<3x8x32xf32>
    %38 = vector.extract_strided_slice %34 {offsets = [0, 32], sizes = [24, 32], strides = [1, 1]} : vector<24x64xf32> to vector<24x32xf32>
    %39 = vector.shape_cast %38 : vector<24x32xf32> to vector<3x8x32xf32>
    "tpu.trace_start"() <{level = 10 : i32, message = "bmh,bnh->bmn"}> : () -> ()
    %cst_26 = arith.constant dense<0.000000e+00> : vector<3x8x8xf32>
    %40 = tpu.matmul %35, %37, %cst_26 {dimension_numbers = #tpu.dot_dimension_numbers<[2], [2], [1], [1], [0, 0, 0, 1, 1, 1], [0], [0]>} : vector<3x8x32xf32>, vector<3x8x32xf32>, vector<3x8x8xf32> -> vector<3x8x8xf32>
    "tpu.trace_stop"() : () -> ()
    %cst_27 = arith.constant 0.176776692 : f32
    %41 = vector.broadcast %cst_27 : f32 to vector<3x8x8xf32>
    %42 = arith.mulf %40, %41 : vector<3x8x8xf32>
    %c0_28 = arith.constant 0 : index
    %c0_29 = arith.constant 0 : index
    %c0_30 = arith.constant 0 : index
    %43 = vector.load %arg4[%c0_28, %c0_29, %c0_30] : memref<3x8x8xf32, #tpu.memory_space<vmem>>, vector<3x8x8xf32>
    %cst_31 = arith.constant 5.000000e-01 : f32
    %44 = vector.broadcast %cst_31 : f32 to vector<3x8x8xf32>
    %45 = arith.cmpf ogt, %43, %44 : vector<3x8x8xf32>
    %cst_32 = arith.constant -1.000000e+09 : f32
    %46 = vector.broadcast %cst_32 : f32 to vector<3x8x8xf32>
    %47 = arith.select %45, %42, %46 : vector<3x8x8xi1>, vector<3x8x8xf32>
    %cst_33 = arith.constant dense<0xFF800000> : vector<3x8xf32>
    %48 = vector.multi_reduction <maximumf>, %47, %cst_33 [2] : vector<3x8x8xf32> to vector<3x8xf32>
    %49 = vector.shape_cast %48 : vector<3x8xf32> to vector<3x8x1xf32>
    %50 = vector.broadcast %49 : vector<3x8x1xf32> to vector<3x8x8xf32>
    %51 = arith.subf %47, %50 : vector<3x8x8xf32>
    %52 = math.exp %51 : vector<3x8x8xf32>
    %cst_34 = arith.constant dense<0.000000e+00> : vector<3x8xf32>
    %53 = vector.multi_reduction <add>, %52, %cst_34 [2] : vector<3x8x8xf32> to vector<3x8xf32>
    %54 = vector.shape_cast %53 : vector<3x8xf32> to vector<3x8x1xf32>
    %55 = tpu.reciprocal %54 {approx = true} : vector<3x8x1xf32> -> vector<3x8x1xf32>
    %56 = vector.broadcast %55 : vector<3x8x1xf32> to vector<3x8x8xf32>
    %57 = arith.mulf %52, %56 : vector<3x8x8xf32>
    "tpu.trace_start"() <{level = 10 : i32, message = "bmn,bnh->bmh"}> : () -> ()
    %cst_35 = arith.constant dense<0.000000e+00> : vector<3x8x32xf32>
    %58 = tpu.matmul %57, %39, %cst_35 {dimension_numbers = #tpu.dot_dimension_numbers<[2], [1], [1], [2], [0, 0, 0, 1, 1, 2], [0], [0]>} : vector<3x8x8xf32>, vector<3x8x32xf32>, vector<3x8x32xf32> -> vector<3x8x32xf32>
    "tpu.trace_stop"() : () -> ()
    %59 = vector.shape_cast %58 : vector<3x8x32xf32> to vector<24x32xf32>
    %c0_36 = arith.constant 0 : index
    %c0_37 = arith.constant 0 : index
    %60 = vector.load %arg12[%c0_36, %c0_37] : memref<32x128xf32, #tpu.memory_space<vmem>>, vector<32x128xf32>
    %cst_38 = arith.constant dense<0.000000e+00> : vector<24x128xf32>
    %61 = tpu.matmul %59, %60, %cst_38 {dimension_numbers = #tpu.dot_dimension_numbers<[1], [0], [0], [1], [0, 0, 1, 1], [], []>} : vector<24x32xf32>, vector<32x128xf32>, vector<24x128xf32> -> vector<24x128xf32>
    %c0_39 = arith.constant 0 : index
    %c0_40 = arith.constant 0 : index
    %62 = vector.load %arg13[%c0_39, %c0_40] : memref<1x128xf32, #tpu.memory_space<vmem>>, vector<1x128xf32>
    %63 = vector.broadcast %62 : vector<1x128xf32> to vector<24x128xf32>
    %64 = arith.addf %61, %63 : vector<24x128xf32>
    %c0_41 = arith.constant 0 : index
    %c0_42 = arith.constant 0 : index
    %c0_43 = arith.constant 0 : index
    %65 = vector.load %arg5[%c0_41, %c0_42, %c0_43] : memref<1x24x1xf32, #tpu.memory_space<vmem>>, vector<1x24x1xf32>
    %66 = vector.shape_cast %65 : vector<1x24x1xf32> to vector<24x1xf32>
    %67 = vector.broadcast %66 : vector<24x1xf32> to vector<24x128xf32>
    %68 = arith.mulf %64, %67 : vector<24x128xf32>
    %c0_44 = arith.constant 0 : index
    %c0_45 = arith.constant 0 : index
    %c0_46 = arith.constant 0 : index
    %69 = vector.load %arg14[%c0_44, %c0_45, %c0_46] : memref<1x24x128xf32, #tpu.memory_space<vmem>>, vector<1x24x128xf32>
    %70 = vector.shape_cast %69 : vector<1x24x128xf32> to vector<24x128xf32>
    %71 = vector.shape_cast %68 : vector<24x128xf32> to vector<1x24x128xf32>
    tpu.vector_store %arg14[%c0_44, %c0_45, %c0_46], %71 {strides = array<i32>} : memref<1x24x128xf32, #tpu.memory_space<vmem>>, vector<1x24x128xf32>,
    return
  }
  func.func @transform_0(%arg0: i32) -> (i32, i32, i32) {
    %c0_i32 = arith.constant 0 : i32
    %c0_i32_0 = arith.constant 0 : i32
    %c0_i32_1 = arith.constant 0 : i32
    return %arg0, %c0_i32, %c0_i32_0 : i32, i32, i32
  }
  func.func @transform_1(%arg0: i32) -> (i32, i32, i32) {
    %c0_i32 = arith.constant 0 : i32
    %c0_i32_0 = arith.constant 0 : i32
    %c0_i32_1 = arith.constant 0 : i32
    return %arg0, %c0_i32, %c0_i32_0 : i32, i32, i32
  }
  func.func @transform_2(%arg0: i32) -> (i32, i32, i32) {
    %c0_i32 = arith.constant 0 : i32
    %c0_i32_0 = arith.constant 0 : i32
    %c0_i32_1 = arith.constant 0 : i32
    return %arg0, %c0_i32, %c0_i32_0 : i32, i32, i32
  }
  func.func @transform_3(%arg0: i32) -> (i32, i32, i32) {
    %c0_i32 = arith.constant 0 : i32
    %c0_i32_0 = arith.constant 0 : i32
    %c0_i32_1 = arith.constant 0 : i32
    return %arg0, %c0_i32, %c0_i32_0 : i32, i32, i32
  }
  func.func @transform_4(%arg0: i32) -> (i32, i32, i32) {
    %c0_i32 = arith.constant 0 : i32
    %c0_i32_0 = arith.constant 0 : i32
    %c0_i32_1 = arith.constant 0 : i32
    return %arg0, %c0_i32, %c0_i32_0 : i32, i32, i32
  }
  func.func @transform_5(%arg0: i32) -> (i32, i32) {
    %c0_i32 = arith.constant 0 : i32
    %c0_i32_0 = arith.constant 0 : i32
    %c0_i32_1 = arith.constant 0 : i32
    return %c0_i32, %c0_i32_0 : i32, i32
  }
  func.func @transform_6(%arg0: i32) -> (i32, i32) {
    %c0_i32 = arith.constant 0 : i32
    %c0_i32_0 = arith.constant 0 : i32
    %c0_i32_1 = arith.constant 0 : i32
    return %c0_i32, %c0_i32_0 : i32, i32
  }
  func.func @transform_7(%arg0: i32) -> (i32, i32) {
    %c0_i32 = arith.constant 0 : i32
    %c0_i32_0 = arith.constant 0 : i32
    %c0_i32_1 = arith.constant 0 : i32
    return %c0_i32, %c0_i32_0 : i32, i32
  }
  func.func @transform_8(%arg0: i32) -> (i32, i32) {
    %c0_i32 = arith.constant 0 : i32
    %c0_i32_0 = arith.constant 0 : i32
    %c0_i32_1 = arith.constant 0 : i32
    return %c0_i32, %c0_i32_0 : i32, i32
  }
  func.func @transform_9(%arg0: i32) -> (i32, i32) {
    %c0_i32 = arith.constant 0 : i32
    %c0_i32_0 = arith.constant 0 : i32
    %c0_i32_1 = arith.constant 0 : i32
    return %c0_i32, %c0_i32_0 : i32, i32
  }
  func.func @transform_10(%arg0: i32) -> (i32, i32) {
    %c0_i32 = arith.constant 0 : i32
    %c0_i32_0 = arith.constant 0 : i32
    %c0_i32_1 = arith.constant 0 : i32
    return %c0_i32, %c0_i32_0 : i32, i32
  }
  func.func @transform_11(%arg0: i32) -> (i32, i32) {
    %c0_i32 = arith.constant 0 : i32
    %c0_i32_0 = arith.constant 0 : i32
    %c0_i32_1 = arith.constant 0 : i32
    return %c0_i32, %c0_i32_0 : i32, i32
  }
  func.func @transform_12(%arg0: i32) -> (i32, i32) {
    %c0_i32 = arith.constant 0 : i32
    %c0_i32_0 = arith.constant 0 : i32
    %c0_i32_1 = arith.constant 0 : i32
    return %c0_i32, %c0_i32_0 : i32, i32
  }
  func.func @transform_13(%arg0: i32) -> (i32, i32, i32) {
    %c0_i32 = arith.constant 0 : i32
    %c0_i32_0 = arith.constant 0 : i32
    %c0_i32_1 = arith.constant 0 : i32
    return %arg0, %c0_i32, %c0_i32_0 : i32, i32, i32
  }
}

</mosaic_0001>

<llo_original>
// kernel: tpu_custom_call.1
$region0: #{tpu_custom_call.1}
  #allocation0 [shape = 'u32[]', space=smem, size = 0x4, offset = 0x4, fixed_abs, tag = 'smem constant byte address 0x4 - core index']
  #allocation1 [shape = 'u32[144,128]{1,0:T(1,128)}', space=vmem, size = 0x12000, scoped, tag = 'internal scratch']
  %s0 = inlined_call_operand.vmem [shape: f32[2,24,14], index: 0, kind: input, shape index: {}]
  %s1 = inlined_call_operand.vmem [shape: f32[2,24,1], index: 1, kind: input, shape index: {}]
  %s2 = inlined_call_operand.vmem [shape: f32[2,96,6], index: 2, kind: input, shape index: {}]
  %s3 = inlined_call_operand.vmem [shape: f32[6,8,8], index: 3, kind: input, shape index: {}]
  %s4 = inlined_call_operand.vmem [shape: f32[2,24,1], index: 4, kind: input, shape index: {}]
  %s5 = inlined_call_operand.vmem [shape: f32[14,32], index: 5, kind: input, shape index: {}]
  %s6 = inlined_call_operand.vmem [shape: f32[1,32], index: 6, kind: input, shape index: {}]
  %s7 = inlined_call_operand.vmem [shape: f32[6,32], index: 7, kind: input, shape index: {}]
  %s8 = inlined_call_operand.vmem [shape: f32[1,32], index: 8, kind: input, shape index: {}]
  %s9 = inlined_call_operand.vmem [shape: f32[32,32], index: 9, kind: input, shape index: {}]
  %s10 = inlined_call_operand.vmem [shape: f32[32,64], index: 10, kind: input, shape index: {}]
  %s11 = inlined_call_operand.vmem [shape: f32[32,128], index: 11, kind: input, shape index: {}]
  %s12 = inlined_call_operand.vmem [shape: f32[1,128], index: 12, kind: input, shape index: {}]
  %s13 = inlined_call_operand.hbm [shape: f32[2,24,128], index: 13, kind: output, shape index: {}]
  %s14 = sld [smem:[#allocation0]]
  $region85: #{tpu_custom_call.1} parent=0
    _
  %s16 = ssub.s32 1, %s14
  %s17 = scalar_select 0, %s16, %s14
  $region1: #{tpu_custom_call.1} parent=0
    #allocation2 [shape = 'u8[24576]{0}', space=vmem, size = 0x6000, scoped, tag = 'output window, operand 0']
    #allocation3 [shape = 's32[2]{0}', space=sflag, size = 0x8, scoped, tag = 'scoped memory for tpu_custom_call.1']
    %18 = vsyncpa [#allocation3], 0
    %s19 = scalar_lea.sflag [#allocation3], 1
    %20 = vsyncpa %s19, 0
    loop: start=0, step=1, limit=4
    $region2: #{tpu_custom_call.1} parent=1 // loop_pre_header
      _
    $region3: #{tpu_custom_call.1} parent=1 // loop_header
      %s22 = sphi 0, %s26
      %p23 = scmp.ge.s32.totalorder %s22, 4
      %s32 = sphi 0, %s34
      %s35 = sphi 0, %s32
      %s36 = sphi 0, %s35
      %s52 = sphi 0, %s36
      %s58 = sphi 0, %s60
      %s61 = sphi 0, %s58
      %s62 = sphi 0, %s61
      %s78 = sphi 0, %s62
      %s84 = sphi 0, %s86
      %s87 = sphi 0, %s84
      %s88 = sphi 0, %s87
      %s104 = sphi 0, %s88
      %s110 = sphi 0, %s112
      %s113 = sphi 0, %s110
      %s114 = sphi 0, %s113
      %s130 = sphi 0, %s114
      %s136 = sphi 0, %s138
      %s139 = sphi 0, %s136
      %s140 = sphi 0, %s139
      %s156 = sphi 0, %s140
      %s160 = sphi 0, %s160
      %s162 = sphi 0, %s160
      %s163 = sphi 0, %s162
      %s177 = sphi 0, %s163
      %s181 = sphi 0, %s181
      %s183 = sphi 0, %s181
      %s184 = sphi 0, %s183
      %s198 = sphi 0, %s184
      %s202 = sphi 0, %s202
      %s204 = sphi 0, %s202
      %s205 = sphi 0, %s204
      %s219 = sphi 0, %s205
      %s223 = sphi 0, %s223
      %s225 = sphi 0, %s223
      %s226 = sphi 0, %s225
      %s240 = sphi 0, %s226
      %s244 = sphi 0, %s244
      %s246 = sphi 0, %s244
      %s247 = sphi 0, %s246
      %s261 = sphi 0, %s247
      %s265 = sphi 0, %s265
      %s267 = sphi 0, %s265
      %s268 = sphi 0, %s267
      %s282 = sphi 0, %s268
      %s286 = sphi 0, %s286
      %s288 = sphi 0, %s286
      %s289 = sphi 0, %s288
      %s303 = sphi 0, %s289
      %s307 = sphi 0, %s307
      %s309 = sphi 0, %s307
      %s310 = sphi 0, %s309
      %s324 = sphi 0, %s310
      %s330 = sphi 0, %s332
      %s333 = sphi 0, %s330
      %s334 = sphi 0, %s333
      %s350 = sphi 0, %s334
    $region4: #{tpu_custom_call.1} parent=1 // loop_header_branch
      %25 = sbr.rel (%p23) target = $region8
    $region5: #{tpu_custom_call.1} parent=1 // loop_body
      %s27 = ssub.s32 %s22, 1
      %s28 = ssub.s32 %s22, 2
      %s29 = sadd.s32 %s22, 1
      %s30 = ssub.s32 %s22, %s29
      %p31 = scmp.eq.s32.totalorder %s30, 0
      %s33 = sadd.s32 %s32, 1
      %s34 = scalar_select %p31, %s32, %s33
      %p37 = pneg %p31
      %p38 = scmp.eq.s32.totalorder %s22, 1
      %p39 = por %p37, %p38
      %p40 = scmp.ne.s32.totalorder %s32, %s35
      %p41 = scmp.eq.s32.totalorder %s22, 0
      %p42 = por %p40, %p41
      %p43 = scmp.ne.s32.totalorder %s32, %s35
      %p44 = scmp.eq.s32.totalorder %s27, 1
      %p45 = por %p43, %p44
      %p46 = scmp.ne.s32.totalorder %s35, %s36
      %p47 = scmp.eq.s32.totalorder %s27, 0
      %p48 = por %p46, %p47
      %p49 = scmp.ne.s32.totalorder %s35, %s36
      %p50 = scmp.eq.s32.totalorder %s28, 1
      %p51 = por %p49, %p50
      %p53 = scmp.ne.s32.totalorder %s36, %s52
      %p54 = scmp.eq.s32.totalorder %s28, 0
      %p55 = por %p53, %p54
      %s56 = ssub.s32 %s22, %s29
      %p57 = scmp.eq.s32.totalorder %s56, 0
      %s59 = sadd.s32 %s58, 1
      %s60 = scalar_select %p57, %s58, %s59
      %p63 = pneg %p57
      %p64 = scmp.eq.s32.totalorder %s22, 1
      %p65 = por %p63, %p64
      %p66 = scmp.ne.s32.totalorder %s58, %s61
      %p67 = scmp.eq.s32.totalorder %s22, 0
      %p68 = por %p66, %p67
      %p69 = scmp.ne.s32.totalorder %s58, %s61
      %p70 = scmp.eq.s32.totalorder %s27, 1
      %p71 = por %p69, %p70
      %p72 = scmp.ne.s32.totalorder %s61, %s62
      %p73 = scmp.eq.s32.totalorder %s27, 0
      %p74 = por %p72, %p73
      %p75 = scmp.ne.s32.totalorder %s61, %s62
      %p76 = scmp.eq.s32.totalorder %s28, 1
      %p77 = por %p75, %p76
      %p79 = scmp.ne.s32.totalorder %s62, %s78
      %p80 = scmp.eq.s32.totalorder %s28, 0
      %p81 = por %p79, %p80
      %s82 = ssub.s32 %s22, %s29
      %p83 = scmp.eq.s32.totalorder %s82, 0
      %s85 = sadd.s32 %s84, 1
      %s86 = scalar_select %p83, %s84, %s85
      %p89 = pneg %p83
      %p90 = scmp.eq.s32.totalorder %s22, 1
      %p91 = por %p89, %p90
      %p92 = scmp.ne.s32.totalorder %s84, %s87
      %p93 = scmp.eq.s32.totalorder %s22, 0
      %p94 = por %p92, %p93
      %p95 = scmp.ne.s32.totalorder %s84, %s87
      %p96 = scmp.eq.s32.totalorder %s27, 1
      %p97 = por %p95, %p96
      %p98 = scmp.ne.s32.totalorder %s87, %s88
      %p99 = scmp.eq.s32.totalorder %s27, 0
      %p100 = por %p98, %p99
      %p101 = scmp.ne.s32.totalorder %s87, %s88
      %p102 = scmp.eq.s32.totalorder %s28, 1
      %p103 = por %p101, %p102
      %p105 = scmp.ne.s32.totalorder %s88, %s104
      %p106 = scmp.eq.s32.totalorder %s28, 0
      %p107 = por %p105, %p106
      %s108 = ssub.s32 %s22, %s29
      %p109 = scmp.eq.s32.totalorder %s108, 0
      %s111 = sadd.s32 %s110, 1
      %s112 = scalar_select %p109, %s110, %s111
      %p115 = pneg %p109
      %p116 = scmp.eq.s32.totalorder %s22, 1
      %p117 = por %p115, %p116
      %p118 = scmp.ne.s32.totalorder %s110, %s113
      %p119 = scmp.eq.s32.totalorder %s22, 0
      %p120 = por %p118, %p119
      %p121 = scmp.ne.s32.totalorder %s110, %s113
      %p122 = scmp.eq.s32.totalorder %s27, 1
      %p123 = por %p121, %p122
      %p124 = scmp.ne.s32.totalorder %s113, %s114
      %p125 = scmp.eq.s32.totalorder %s27, 0
      %p126 = por %p124, %p125
      %p127 = scmp.ne.s32.totalorder %s113, %s114
      %p128 = scmp.eq.s32.totalorder %s28, 1
      %p129 = por %p127, %p128
      %p131 = scmp.ne.s32.totalorder %s114, %s130
      %p132 = scmp.eq.s32.totalorder %s28, 0
      %p133 = por %p131, %p132
      %s134 = ssub.s32 %s22, %s29
      %p135 = scmp.eq.s32.totalorder %s134, 0
      %s137 = sadd.s32 %s136, 1
      %s138 = scalar_select %p135, %s136, %s137
      %p141 = pneg %p135
      %p142 = scmp.eq.s32.totalorder %s22, 1
      %p143 = por %p141, %p142
      %p144 = scmp.ne.s32.totalorder %s136, %s139
      %p145 = scmp.eq.s32.totalorder %s22, 0
      %p146 = por %p144, %p145
      %p147 = scmp.ne.s32.totalorder %s136, %s139
      %p148 = scmp.eq.s32.totalorder %s27, 1
      %p149 = por %p147, %p148
      %p150 = scmp.ne.s32.totalorder %s139, %s140
      %p151 = scmp.eq.s32.totalorder %s27, 0
      %p152 = por %p150, %p151
      %p153 = scmp.ne.s32.totalorder %s139, %s140
      %p154 = scmp.eq.s32.totalorder %s28, 1
      %p155 = por %p153, %p154
      %p157 = scmp.ne.s32.totalorder %s140, %s156
      %p158 = scmp.eq.s32.totalorder %s28, 0
      %p159 = por %p157, %p158
      %s161 = sadd.s32 %s160, 1
      %p164 = scmp.eq.s32.totalorder %s22, 1
      %p165 = scmp.ne.s32.totalorder %s160, %s162
      %p166 = scmp.eq.s32.totalorder %s22, 0
      %p167 = por %p165, %p166
      %p168 = scmp.ne.s32.totalorder %s160, %s162
      %p169 = scmp.eq.s32.totalorder %s27, 1
      %p170 = por %p168, %p169
      %p171 = scmp.ne.s32.totalorder %s162, %s163
      %p172 = scmp.eq.s32.totalorder %s27, 0
      %p173 = por %p171, %p172
      %p174 = scmp.ne.s32.totalorder %s162, %s163
      %p175 = scmp.eq.s32.totalorder %s28, 1
      %p176 = por %p174, %p175
      %p178 = scmp.ne.s32.totalorder %s163, %s177
      %p179 = scmp.eq.s32.totalorder %s28, 0
      %p180 = por %p178, %p179
      %s182 = sadd.s32 %s181, 1
      %p185 = scmp.eq.s32.totalorder %s22, 1
      %p186 = scmp.ne.s32.totalorder %s181, %s183
      %p187 = scmp.eq.s32.totalorder %s22, 0
      %p188 = por %p186, %p187
      %p189 = scmp.ne.s32.totalorder %s181, %s183
      %p190 = scmp.eq.s32.totalorder %s27, 1
      %p191 = por %p189, %p190
      %p192 = scmp.ne.s32.totalorder %s183, %s184
      %p193 = scmp.eq.s32.totalorder %s27, 0
      %p194 = por %p192, %p193
      %p195 = scmp.ne.s32.totalorder %s183, %s184
      %p196 = scmp.eq.s32.totalorder %s28, 1
      %p197 = por %p195, %p196
      %p199 = scmp.ne.s32.totalorder %s184, %s198
      %p200 = scmp.eq.s32.totalorder %s28, 0
      %p201 = por %p199, %p200
      %s203 = sadd.s32 %s202, 1
      %p206 = scmp.eq.s32.totalorder %s22, 1
      %p207 = scmp.ne.s32.totalorder %s202, %s204
      %p208 = scmp.eq.s32.totalorder %s22, 0
      %p209 = por %p207, %p208
      %p210 = scmp.ne.s32.totalorder %s202, %s204
      %p211 = scmp.eq.s32.totalorder %s27, 1
      %p212 = por %p210, %p211
      %p213 = scmp.ne.s32.totalorder %s204, %s205
      %p214 = scmp.eq.s32.totalorder %s27, 0
      %p215 = por %p213, %p214
      %p216 = scmp.ne.s32.totalorder %s204, %s205
      %p217 = scmp.eq.s32.totalorder %s28, 1
      %p218 = por %p216, %p217
      %p220 = scmp.ne.s32.totalorder %s205, %s219
      %p221 = scmp.eq.s32.totalorder %s28, 0
      %p222 = por %p220, %p221
      %s224 = sadd.s32 %s223, 1
      %p227 = scmp.eq.s32.totalorder %s22, 1
      %p228 = scmp.ne.s32.totalorder %s223, %s225
      %p229 = scmp.eq.s32.totalorder %s22, 0
      %p230 = por %p228, %p229
      %p231 = scmp.ne.s32.totalorder %s223, %s225
      %p232 = scmp.eq.s32.totalorder %s27, 1
      %p233 = por %p231, %p232
      %p234 = scmp.ne.s32.totalorder %s225, %s226
      %p235 = scmp.eq.s32.totalorder %s27, 0
      %p236 = por %p234, %p235
      %p237 = scmp.ne.s32.totalorder %s225, %s226
      %p238 = scmp.eq.s32.totalorder %s28, 1
      %p239 = por %p237, %p238
      %p241 = scmp.ne.s32.totalorder %s226, %s240
      %p242 = scmp.eq.s32.totalorder %s28, 0
      %p243 = por %p241, %p242
      %s245 = sadd.s32 %s244, 1
      %p248 = scmp.eq.s32.totalorder %s22, 1
      %p249 = scmp.ne.s32.totalorder %s244, %s246
      %p250 = scmp.eq.s32.totalorder %s22, 0
      %p251 = por %p249, %p250
      %p252 = scmp.ne.s32.totalorder %s244, %s246
      %p253 = scmp.eq.s32.totalorder %s27, 1
      %p254 = por %p252, %p253
      %p255 = scmp.ne.s32.totalorder %s246, %s247
      %p256 = scmp.eq.s32.totalorder %s27, 0
      %p257 = por %p255, %p256
      %p258 = scmp.ne.s32.totalorder %s246, %s247
      %p259 = scmp.eq.s32.totalorder %s28, 1
      %p260 = por %p258, %p259
      %p262 = scmp.ne.s32.totalorder %s247, %s261
      %p263 = scmp.eq.s32.totalorder %s28, 0
      %p264 = por %p262, %p263
      %s266 = sadd.s32 %s265, 1
      %p269 = scmp.eq.s32.totalorder %s22, 1
      %p270 = scmp.ne.s32.totalorder %s265, %s267
      %p271 = scmp.eq.s32.totalorder %s22, 0
      %p272 = por %p270, %p271
      %p273 = scmp.ne.s32.totalorder %s265, %s267
      %p274 = scmp.eq.s32.totalorder %s27, 1
      %p275 = por %p273, %p274
      %p276 = scmp.ne.s32.totalorder %s267, %s268
      %p277 = scmp.eq.s32.totalorder %s27, 0
      %p278 = por %p276, %p277
      %p279 = scmp.ne.s32.totalorder %s267, %s268
      %p280 = scmp.eq.s32.totalorder %s28, 1
      %p281 = por %p279, %p280
      %p283 = scmp.ne.s32.totalorder %s268, %s282
      %p284 = scmp.eq.s32.totalorder %s28, 0
      %p285 = por %p283, %p284
      %s287 = sadd.s32 %s286, 1
      %p290 = scmp.eq.s32.totalorder %s22, 1
      %p291 = scmp.ne.s32.totalorder %s286, %s288
      %p292 = scmp.eq.s32.totalorder %s22, 0
      %p293 = por %p291, %p292
      %p294 = scmp.ne.s32.totalorder %s286, %s288
      %p295 = scmp.eq.s32.totalorder %s27, 1
      %p296 = por %p294, %p295
      %p297 = scmp.ne.s32.totalorder %s288, %s289
      %p298 = scmp.eq.s32.totalorder %s27, 0
      %p299 = por %p297, %p298
      %p300 = scmp.ne.s32.totalorder %s288, %s289
      %p301 = scmp.eq.s32.totalorder %s28, 1
      %p302 = por %p300, %p301
      %p304 = scmp.ne.s32.totalorder %s289, %s303
      %p305 = scmp.eq.s32.totalorder %s28, 0
      %p306 = por %p304, %p305
      %s308 = sadd.s32 %s307, 1
      %p311 = scmp.eq.s32.totalorder %s22, 1
      %p312 = scmp.ne.s32.totalorder %s307, %s309
      %p313 = scmp.eq.s32.totalorder %s22, 0
      %p314 = por %p312, %p313
      %p315 = scmp.ne.s32.totalorder %s307, %s309
      %p316 = scmp.eq.s32.totalorder %s27, 1
      %p317 = por %p315, %p316
      %p318 = scmp.ne.s32.totalorder %s309, %s310
      %p319 = scmp.eq.s32.totalorder %s27, 0
      %p320 = por %p318, %p319
      %p321 = scmp.ne.s32.totalorder %s309, %s310
      %p322 = scmp.eq.s32.totalorder %s28, 1
      %p323 = por %p321, %p322
      %p325 = scmp.ne.s32.totalorder %s310, %s324
      %p326 = scmp.eq.s32.totalorder %s28, 0
      %p327 = por %p325, %p326
      %s328 = ssub.s32 %s22, %s29
      %p329 = scmp.eq.s32.totalorder %s328, 0
      %s331 = sadd.s32 %s330, 1
      %s332 = scalar_select %p329, %s330, %s331
      %p335 = pneg %p329
      %p336 = scmp.eq.s32.totalorder %s22, 1
      %p337 = por %p335, %p336
      %p338 = scmp.ne.s32.totalorder %s330, %s333
      %p339 = scmp.eq.s32.totalorder %s22, 0
      %p340 = por %p338, %p339
      %p341 = scmp.ne.s32.totalorder %s330, %s333
      %p342 = scmp.eq.s32.totalorder %s27, 1
      %p343 = por %p341, %p342
      %p344 = scmp.ne.s32.totalorder %s333, %s334
      %p345 = scmp.eq.s32.totalorder %s27, 0
      %p346 = por %p344, %p345
      %p347 = scmp.ne.s32.totalorder %s333, %s334
      %p348 = scmp.eq.s32.totalorder %s28, 1
      %p349 = por %p347, %p348
      %p351 = scmp.ne.s32.totalorder %s334, %s350
      %p352 = scmp.eq.s32.totalorder %s28, 0
      %p353 = por %p351, %p352
      %p354 = scmp.le.s32.totalorder 1, %s22
      %p355 = scmp.lt.s32.totalorder %s22, 3
      %p356 = pnand %p354, %p355
      %p357 = pneg %p356
      // Predicated region
      $region9: #{tpu_custom_call.1} parent=5 // pred_check
        _
      $region10: #{tpu_custom_call.1} parent=5 // pred_check_branch
        %359 = sbr.rel (%p356) target = $region12
      $region11: #{tpu_custom_call.1} parent=5 // pred_region
        %s360 = ssub.s32 %s22, 1
        // Predicated region
        $region13: #{tpu_custom_call.1} parent=11 // pred_check
          %p361 = pneg %p173
        $region14: #{tpu_custom_call.1} parent=11 // pred_check_branch
          %363 = sbr.rel (%p361) target = $region16
        $region15: #{tpu_custom_call.1} parent=11 // pred_region
          _
        $region16: #{tpu_custom_call.1} parent=11 // pred_fallthru
          _
        // Predicated region
        $region17: #{tpu_custom_call.1} parent=11 // pred_check
          %p364 = pneg %p194
        $region18: #{tpu_custom_call.1} parent=11 // pred_check_branch
          %366 = sbr.rel (%p364) target = $region20
        $region19: #{tpu_custom_call.1} parent=11 // pred_region
          _
        $region20: #{tpu_custom_call.1} parent=11 // pred_fallthru
          _
        // Predicated region
        $region21: #{tpu_custom_call.1} parent=11 // pred_check
          %p367 = pneg %p215
        $region22: #{tpu_custom_call.1} parent=11 // pred_check_branch
          %369 = sbr.rel (%p367) target = $region24
        $region23: #{tpu_custom_call.1} parent=11 // pred_region
          _
        $region24: #{tpu_custom_call.1} parent=11 // pred_fallthru
          _
        // Predicated region
        $region25: #{tpu_custom_call.1} parent=11 // pred_check
          %p370 = pneg %p236
        $region26: #{tpu_custom_call.1} parent=11 // pred_check_branch
          %372 = sbr.rel (%p370) target = $region28
        $region27: #{tpu_custom_call.1} parent=11 // pred_region
          _
        $region28: #{tpu_custom_call.1} parent=11 // pred_fallthru
          _
        // Predicated region
        $region29: #{tpu_custom_call.1} parent=11 // pred_check
          %p373 = pneg %p257
        $region30: #{tpu_custom_call.1} parent=11 // pred_check_branch
          %375 = sbr.rel (%p373) target = $region32
        $region31: #{tpu_custom_call.1} parent=11 // pred_region
          _
        $region32: #{tpu_custom_call.1} parent=11 // pred_fallthru
          _
        // Predicated region
        $region33: #{tpu_custom_call.1} parent=11 // pred_check
          %p376 = pneg %p278
        $region34: #{tpu_custom_call.1} parent=11 // pred_check_branch
          %378 = sbr.rel (%p376) target = $region36
        $region35: #{tpu_custom_call.1} parent=11 // pred_region
          _
        $region36: #{tpu_custom_call.1} parent=11 // pred_fallthru
          _
        // Predicated region
        $region37: #{tpu_custom_call.1} parent=11 // pred_check
          %p379 = pneg %p299
        $region38: #{tpu_custom_call.1} parent=11 // pred_check_branch
          %381 = sbr.rel (%p379) target = $region40
        $region39: #{tpu_custom_call.1} parent=11 // pred_region
          _
        $region40: #{tpu_custom_call.1} parent=11 // pred_fallthru
          _
        // Predicated region
        $region41: #{tpu_custom_call.1} parent=11 // pred_check
          %p382 = pneg %p320
        $region42: #{tpu_custom_call.1} parent=11 // pred_check_branch
          %384 = sbr.rel (%p382) target = $region44
        $region43: #{tpu_custom_call.1} parent=11 // pred_region
          _
        $region44: #{tpu_custom_call.1} parent=11 // pred_fallthru
          _
      $region12: #{tpu_custom_call.1} parent=5 // pred_fallthru
        _
      %p385 = scmp.lt.s32.totalorder %s22, 2
      // Predicated region
      $region45: #{tpu_custom_call.1} parent=5 // pred_check
        %p386 = pneg %p385
      $region46: #{tpu_custom_call.1} parent=5 // pred_check_branch
        %388 = sbr.rel (%p386) target = $region48
      $region47: #{tpu_custom_call.1} parent=5 // pred_region
        // Predicated region
        $region49: #{tpu_custom_call.1} parent=47 // pred_check
          %p389 = pneg %p42
        $region50: #{tpu_custom_call.1} parent=47 // pred_check_branch
          %391 = sbr.rel (%p389) target = $region52
        $region51: #{tpu_custom_call.1} parent=47 // pred_region
          %p392 = scmp.lt.s32.totalorder %s22, 1
          %s393 = scalar_select %p392, %s22, 1
          %s394 = smul.addr %s393, 3
          %s395 = smul.addr %s394, 8
          %s396 = scalar_lea.vmem %s0, %s395
        $region52: #{tpu_custom_call.1} parent=47 // pred_fallthru
          _
        // Predicated region
        $region53: #{tpu_custom_call.1} parent=47 // pred_check
          %p397 = pneg %p68
        $region54: #{tpu_custom_call.1} parent=47 // pred_check_branch
          %399 = sbr.rel (%p397) target = $region56
        $region55: #{tpu_custom_call.1} parent=47 // pred_region
          %p400 = scmp.lt.s32.totalorder %s22, 1
          %s401 = scalar_select %p400, %s22, 1
          %s402 = smul.addr %s401, 3
          %s403 = smul.addr %s402, 8
          %s404 = scalar_lea.vmem %s1, %s403
        $region56: #{tpu_custom_call.1} parent=47 // pred_fallthru
          _
        // Predicated region
        $region57: #{tpu_custom_call.1} parent=47 // pred_check
          %p405 = pneg %p94
        $region58: #{tpu_custom_call.1} parent=47 // pred_check_branch
          %407 = sbr.rel (%p405) target = $region60
        $region59: #{tpu_custom_call.1} parent=47 // pred_region
          %p408 = scmp.lt.s32.totalorder %s22, 1
          %s409 = scalar_select %p408, %s22, 1
          %s410 = smul.addr %s409, 12
          %s411 = smul.addr %s410, 8
          %s412 = scalar_lea.vmem %s2, %s411
        $region60: #{tpu_custom_call.1} parent=47 // pred_fallthru
          _
        // Predicated region
        $region61: #{tpu_custom_call.1} parent=47 // pred_check
          %p413 = pneg %p120
        $region62: #{tpu_custom_call.1} parent=47 // pred_check_branch
          %415 = sbr.rel (%p413) target = $region64
        $region63: #{tpu_custom_call.1} parent=47 // pred_region
          %s416 = smul.u32 3, %s22
          %p417 = scmp.lt.s32.totalorder %s416, 5
          %s418 = scalar_select %p417, %s416, 5
          %s419 = smul.addr %s418, 8
          %s420 = scalar_lea.vmem %s3, %s419
          %s421 = smul.u32 3, %s22
        $region64: #{tpu_custom_call.1} parent=47 // pred_fallthru
          _
        // Predicated region
        $region65: #{tpu_custom_call.1} parent=47 // pred_check
          %p422 = pneg %p146
        $region66: #{tpu_custom_call.1} parent=47 // pred_check_branch
          %424 = sbr.rel (%p422) target = $region68
        $region67: #{tpu_custom_call.1} parent=47 // pred_region
          %p425 = scmp.lt.s32.totalorder %s22, 1
          %s426 = scalar_select %p425, %s22, 1
          %s427 = smul.addr %s426, 3
          %s428 = smul.addr %s427, 8
          %s429 = scalar_lea.vmem %s4, %s428
        $region68: #{tpu_custom_call.1} parent=47 // pred_fallthru
          _
      $region48: #{tpu_custom_call.1} parent=5 // pred_fallthru
        _
      %p430 = scmp.le.s32.totalorder 1, %s22
      %p431 = scmp.lt.s32.totalorder %s22, 3
      %p432 = pnand %p430, %p431
      %p433 = pneg %p432
      // Predicated region
      $region69: #{tpu_custom_call.1} parent=5 // pred_check
        _
      $region70: #{tpu_custom_call.1} parent=5 // pred_check_branch
        %435 = sbr.rel (%p432) target = $region72
      $region71: #{tpu_custom_call.1} parent=5 // pred_region
        %s436 = ssub.s32 %s22, 1
        %p437 = scmp.lt.s32.totalorder %s27, 1
        %s438 = scalar_select %p437, %s27, 1
        %s439 = smul.addr %s438, 3
        %s440 = smul.addr %s439, 8
        %s441 = scalar_lea.vmem %s0, %s440
        %p442 = pneg %p48
        %p443 = pneg %p45
        %p444 = scmp.lt.s32.totalorder %s27, 1
        %s445 = scalar_select %p444, %s27, 1
        %s446 = smul.addr %s445, 3
        %s447 = smul.addr %s446, 8
        %s448 = scalar_lea.vmem %s1, %s447
        %p449 = pneg %p74
        %p450 = pneg %p71
        %p451 = scmp.lt.s32.totalorder %s27, 1
        %s452 = scalar_select %p451, %s27, 1
        %s453 = smul.addr %s452, 12
        %s454 = smul.addr %s453, 8
        %s455 = scalar_lea.vmem %s2, %s454
        %p456 = pneg %p100
        %p457 = pneg %p97
        %s458 = smul.u32 3, %s27
        %p459 = scmp.lt.s32.totalorder %s458, 5
        %s460 = scalar_select %p459, %s458, 5
        %s461 = smul.addr %s460, 8
        %s462 = scalar_lea.vmem %s3, %s461
        %p463 = pneg %p126
        %p464 = pneg %p123
        %p465 = scmp.lt.s32.totalorder %s27, 1
        %s466 = scalar_select %p465, %s27, 1
        %s467 = smul.addr %s466, 3
        %s468 = smul.addr %s467, 8
        %s469 = scalar_lea.vmem %s4, %s468
        %p470 = pneg %p152
        %p471 = pneg %p149
        %p472 = pneg %p173
        %p473 = pneg %p170
        %p474 = pneg %p194
        %p475 = pneg %p191
        %p476 = pneg %p215
        %p477 = pneg %p212
        %p478 = pneg %p236
        %p479 = pneg %p233
        %p480 = pneg %p257
        %p481 = pneg %p254
        %p482 = pneg %p278
        %p483 = pneg %p275
        %p484 = pneg %p299
        %p485 = pneg %p296
        %p486 = pneg %p320
        %p487 = pneg %p317
        %p488 = pneg %p346
        %p489 = pneg %p343
        %s490 = sand.u32 %s333, 1
        %s491 = scalar_lea.sflag [#allocation3], %s490
        %s492 = sand.u32 %s333, 1
        %s493 = smul.addr %s492, 24
        %s494 = scalar_lea.vmem [#allocation2], %s493
        %p495 = scmp.lt.s32.totalorder %s27, 1
        %s496 = scalar_select %p495, %s27, 1
        %s497 = smul.addr %s496, 3
        %s498 = smul.addr %s497, 8
        %s499 = scalar_lea.vmem %s0, %s498
        %p500 = scmp.lt.s32.totalorder %s27, 1
        %s501 = scalar_select %p500, %s27, 1
        %s502 = smul.addr %s501, 3
        %s503 = smul.addr %s502, 8
        %s504 = scalar_lea.vmem %s1, %s503
        %p505 = scmp.lt.s32.totalorder %s27, 1
        %s506 = scalar_select %p505, %s27, 1
        %s507 = smul.addr %s506, 12
        %s508 = smul.addr %s507, 8
        %s509 = scalar_lea.vmem %s2, %s508
        %s510 = smul.u32 3, %s27
        %p511 = scmp.lt.s32.totalorder %s510, 5
        %s512 = scalar_select %p511, %s510, 5
        %s513 = smul.addr %s512, 8
        %s514 = scalar_lea.vmem %s3, %s513
        %s515 = smul.u32 3, %s27
        %p516 = scmp.lt.s32.totalorder %s27, 1
        %s517 = scalar_select %p516, %s27, 1
        %s518 = smul.addr %s517, 3
        %s519 = smul.addr %s518, 8
        %s520 = scalar_lea.vmem %s4, %s519
        %v521 = vld [vmem:[%s499] sm:$0xff]
        %v522 = vld [vmem:[%s499 + $0x8] sm:$0xff]
        %v523 = vld [vmem:[%s499 + $0x10] sm:$0xff]
        %v524 = vld [vmem:[%s5] sm:$0xff]
        %v525 = vld [vmem:[%s5 + $0x8] sm:$0x3f]
        %v526 = vld [vmem:[%s6] sm:$0x1]
        %v528 = vlaneseq
        %v529 = vshrl.u32 %v528, 7
        %v530 = vsub.s32 0, %v529
        %v531 = vrot.slane %v526, %v530
        %vm533 = vcmask 113664
        %v535 = vsel %vm533, %v521, 0
        %v538 = vsel %vm533, %v522, 0
        %v541 = vsel %vm533, %v523, 0
        %vm543 = vcmask 1045504
        %v545 = vsel %vm543, %v525, 0
        %547 = vmatprep.subr.mxu0 0.0
        %548 = vmatpush1.msra.mxu0 %v524
        %549 = vmatprep.subr.mxu0 0.0
        %550 = vmatpush1.msra.mxu0 %v545
        %551 = vmatprep.subr.mxu0 0.0
        %552 = vmatpush1.msra.mxu0 0.0
        %553 = vmatprep.subr.mxu0 0.0
        %554 = vmatpush1.msra.mxu0 0.0
        %555 = vmatprep.subr.mxu0 0.0
        %556 = vmatpush1.msra.mxu0 0.0
        %557 = vmatprep.subr.mxu0 0.0
        %558 = vmatpush1.msra.mxu0 0.0
        %559 = vmatprep.subr.mxu0 0.0
        %560 = vmatpush1.msra.mxu0 0.0
        %561 = vmatprep.subr.mxu0 0.0
        %562 = vmatpush1.msra.mxu0 0.0
        %563 = vmatprep.subr.mxu0 0.0
        %564 = vmatpush1.msra.mxu0 0.0
        %565 = vmatprep.subr.mxu0 0.0
        %566 = vmatpush1.msra.mxu0 0.0
        %567 = vmatprep.subr.mxu0 0.0
        %568 = vmatpush1.msra.mxu0 0.0
        %569 = vmatprep.subr.mxu0 0.0
        %570 = vmatpush1.msra.mxu0 0.0
        %571 = vmatprep.subr.mxu0 0.0
        %572 = vmatpush1.msra.mxu0 0.0
        %573 = vmatprep.subr.mxu0 0.0
        %574 = vmatpush1.msra.mxu0 0.0
        %575 = vmatprep.subr.mxu0 0.0
        %576 = vmatpush1.msra.mxu0 0.0
        %577 = vmatprep.subr.mxu0 0.0
        %578 = vmatpush1.msra.mxu0 0.0
        %579 = vmatprep.subr.mxu0 0.0
        %580 = vmatpush1.msra.mxu0 0.0
        %581 = vmatprep.subr.mxu0 0.0
        %582 = vmatpush1.msra.mxu0 0.0
        %583 = vmatprep.subr.mxu0 0.0
        %584 = vmatpush1.msra.mxu0 0.0
        %585 = vmatprep.subr.mxu0 0.0
        %586 = vmatpush1.msra.mxu0 0.0
        %587 = vmatprep.subr.mxu0 0.0
        %588 = vmatpush1.msra.mxu0 0.0
        %589 = vmatprep.subr.mxu0 0.0
        %590 = vmatpush1.msra.mxu0 0.0
        %591 = vmatprep.subr.mxu0 0.0
        %592 = vmatpush1.msra.mxu0 0.0
        %593 = vmatprep.subr.mxu0 0.0
        %594 = vmatpush1.msra.mxu0 0.0
        %595 = vmatprep.subr.mxu0 0.0
        %596 = vmatpush1.msra.mxu0 0.0
        %597 = vmatprep.subr.mxu0 0.0
        %598 = vmatpush1.msra.mxu0 0.0
        %599 = vmatprep.subr.mxu0 0.0
        %600 = vmatpush1.msra.mxu0 0.0
        %601 = vmatprep.subr.mxu0 0.0
        %602 = vmatpush1.msra.mxu0 0.0
        %603 = vmatprep.subr.mxu0 0.0
        %604 = vmatpush1.msra.mxu0 0.0
        %605 = vmatprep.subr.mxu0 0.0
        %606 = vmatpush1.msra.mxu0 0.0
        %607 = vmatprep.subr.mxu0 0.0
        %608 = vmatpush1.msra.mxu0 0.0
        %609 = vmatprep.subr.mxu0 0.0
        %610 = vmatpush1.msra.mxu0 0.0
        %611 = vmatprep.mubr.f32.mxu0 0.0
        %612 = vmatmul.mubr.f32.gmra.mrb[0].mxu0 %v535
        %v613 = vpop.f32.mrb[0].mxu0
        %v614 = vadd.f32 %v531, %v613
        %v615 = vpop.f32.mrb[0].mxu0
        %616 = vmatprep.mubr.f32.mxu0 0.0
        %617 = vmatmul.mubr.f32.gmra.mrb[0].mxu0 %v538
        %v618 = vpop.f32.mrb[0].mxu0
        %v619 = vadd.f32 %v531, %v618
        %v620 = vpop.f32.mrb[0].mxu0
        %621 = vmatprep.mubr.f32.mxu0 0.0
        %622 = vmatmul.mubr.f32.gmra.mrb[0].mxu0 %v541
        %v623 = vpop.f32.mrb[0].mxu0
        %v624 = vadd.f32 %v531, %v623
        %v625 = vpop.f32.mrb[0].mxu0
        %626 = vdwg.mxu0
        %v627 = vmax.f32 %v614, 0.0
        %v628 = vmax.f32 %v619, 0.0
        %v629 = vmax.f32 %v624, 0.0
        %v630 = vld [vmem:[%s504] sm:$0xff]
        %v631 = vld [vmem:[%s504 + $0x8] sm:$0xff]
        %v632 = vld [vmem:[%s504 + $0x10] sm:$0xff]
        %634 = vset.pattern.permute.xlu0 0
        %635 = vperm.xlu0 %634, %v630
        %v636 = vpop.permute.xlu0 %635
        %639 = vset.pattern.permute.xlu0 0
        %640 = vperm.xlu0 %639, %v631
        %v641 = vpop.permute.xlu0 %640
        %644 = vset.pattern.permute.xlu0 0
        %645 = vperm.xlu0 %644, %v632
        %v646 = vpop.permute.xlu0 %645
        %v648 = vmul.f32 %v627, %v636
        %v649 = vmul.f32 %v628, %v641
        %v650 = vmul.f32 %v629, %v646
        %v651 = vld [vmem:[%s509] sm:$0xff]
        %v652 = vld [vmem:[%s509 + $0x8] sm:$0xff]
        %v653 = vld [vmem:[%s509 + $0x10] sm:$0xff]
        %v654 = vld [vmem:[%s509 + $0x18] sm:$0xff]
        %v655 = vld [vmem:[%s509 + $0x20] sm:$0xff]
        %v656 = vld [vmem:[%s509 + $0x28] sm:$0xff]
        %v657 = vld [vmem:[%s509 + $0x30] sm:$0xff]
        %v658 = vld [vmem:[%s509 + $0x38] sm:$0xff]
        %v659 = vld [vmem:[%s509 + $0x40] sm:$0xff]
        %v660 = vld [vmem:[%s509 + $0x48] sm:$0xff]
        %v661 = vld [vmem:[%s509 + $0x50] sm:$0xff]
        %v662 = vld [vmem:[%s509 + $0x58] sm:$0xff]
        %v663 = vld [vmem:[%s7] sm:$0x3f]
        %v664 = vld [vmem:[%s8] sm:$0x1]
        %v666 = vlaneseq
        %v667 = vshrl.u32 %v666, 7
        %v668 = vsub.s32 0, %v667
        %v669 = vrot.slane %v664, %v668
        %vm671 = vcmask 48128
        %v673 = vsel %vm671, %v651, 0
        %v676 = vsel %vm671, %v652, 0
        %v679 = vsel %vm671, %v653, 0
        %v682 = vsel %vm671, %v654, 0
        %v685 = vsel %vm671, %v655, 0
        %v688 = vsel %vm671, %v656, 0
        %v691 = vsel %vm671, %v657, 0
        %v694 = vsel %vm671, %v658, 0
        %v697 = vsel %vm671, %v659, 0
        %v700 = vsel %vm671, %v660, 0
        %v703 = vsel %vm671, %v661, 0
        %v706 = vsel %vm671, %v662, 0
        %v709 = vsel %vm543, %v663, 0
        %711 = vmatprep.subr.mxu0 0.0
        %712 = vmatpush1.msra.mxu0 %v709
        %713 = vmatprep.subr.mxu0 0.0
        %714 = vmatpush1.msra.mxu0 0.0
        %715 = vmatprep.subr.mxu0 0.0
        %716 = vmatpush1.msra.mxu0 0.0
        %717 = vmatprep.subr.mxu0 0.0
        %718 = vmatpush1.msra.mxu0 0.0
        %719 = vmatprep.subr.mxu0 0.0
        %720 = vmatpush1.msra.mxu0 0.0
        %721 = vmatprep.subr.mxu0 0.0
        %722 = vmatpush1.msra.mxu0 0.0
        %723 = vmatprep.subr.mxu0 0.0
        %724 = vmatpush1.msra.mxu0 0.0
        %725 = vmatprep.subr.mxu0 0.0
        %726 = vmatpush1.msra.mxu0 0.0
        %727 = vmatprep.subr.mxu0 0.0
        %728 = vmatpush1.msra.mxu0 0.0
        %729 = vmatprep.subr.mxu0 0.0
        %730 = vmatpush1.msra.mxu0 0.0
        %731 = vmatprep.subr.mxu0 0.0
        %732 = vmatpush1.msra.mxu0 0.0
        %733 = vmatprep.subr.mxu0 0.0
        %734 = vmatpush1.msra.mxu0 0.0
        %735 = vmatprep.subr.mxu0 0.0
        %736 = vmatpush1.msra.mxu0 0.0
        %737 = vmatprep.subr.mxu0 0.0
        %738 = vmatpush1.msra.mxu0 0.0
        %739 = vmatprep.subr.mxu0 0.0
        %740 = vmatpush1.msra.mxu0 0.0
        %741 = vmatprep.subr.mxu0 0.0
        %742 = vmatpush1.msra.mxu0 0.0
        %743 = vmatprep.subr.mxu0 0.0
        %744 = vmatpush1.msra.mxu0 0.0
        %745 = vmatprep.subr.mxu0 0.0
        %746 = vmatpush1.msra.mxu0 0.0
        %747 = vmatprep.subr.mxu0 0.0
        %748 = vmatpush1.msra.mxu0 0.0
        %749 = vmatprep.subr.mxu0 0.0
        %750 = vmatpush1.msra.mxu0 0.0
        %751 = vmatprep.subr.mxu0 0.0
        %752 = vmatpush1.msra.mxu0 0.0
        %753 = vmatprep.subr.mxu0 0.0
        %754 = vmatpush1.msra.mxu0 0.0
        %755 = vmatprep.subr.mxu0 0.0
        %756 = vmatpush1.msra.mxu0 0.0
        %757 = vmatprep.subr.mxu0 0.0
        %758 = vmatpush1.msra.mxu0 0.0
        %759 = vmatprep.subr.mxu0 0.0
        %760 = vmatpush1.msra.mxu0 0.0
        %761 = vmatprep.subr.mxu0 0.0
        %762 = vmatpush1.msra.mxu0 0.0
        %763 = vmatprep.subr.mxu0 0.0
        %764 = vmatpush1.msra.mxu0 0.0
        %765 = vmatprep.subr.mxu0 0.0
        %766 = vmatpush1.msra.mxu0 0.0
        %767 = vmatprep.subr.mxu0 0.0
        %768 = vmatpush1.msra.mxu0 0.0
        %769 = vmatprep.subr.mxu0 0.0
        %770 = vmatpush1.msra.mxu0 0.0
        %771 = vmatprep.subr.mxu0 0.0
        %772 = vmatpush1.msra.mxu0 0.0
        %773 = vmatprep.subr.mxu0 0.0
        %774 = vmatpush1.msra.mxu0 0.0
        %775 = vmatprep.mubr.f32.mxu0 0.0
        %776 = vmatmul.mubr.f32.gmra.mrb[0].mxu0 %v673
        %v777 = vpop.f32.mrb[0].mxu0
        %v778 = vadd.f32 %v669, %v777
        %v779 = vpop.f32.mrb[0].mxu0
        %780 = vmatprep.mubr.f32.mxu0 0.0
        %781 = vmatmul.mubr.f32.gmra.mrb[0].mxu0 %v676
        %v782 = vpop.f32.mrb[0].mxu0
        %v783 = vadd.f32 %v669, %v782
        %v784 = vpop.f32.mrb[0].mxu0
        %785 = vmatprep.mubr.f32.mxu0 0.0
        %786 = vmatmul.mubr.f32.gmra.mrb[0].mxu0 %v679
        %v787 = vpop.f32.mrb[0].mxu0
        %v788 = vadd.f32 %v669, %v787
        %v789 = vpop.f32.mrb[0].mxu0
        %790 = vmatprep.mubr.f32.mxu0 0.0
        %791 = vmatmul.mubr.f32.gmra.mrb[0].mxu0 %v682
        %v792 = vpop.f32.mrb[0].mxu0
        %v793 = vadd.f32 %v669, %v792
        %v794 = vpop.f32.mrb[0].mxu0
        %795 = vmatprep.mubr.f32.mxu0 0.0
        %796 = vmatmul.mubr.f32.gmra.mrb[0].mxu0 %v685
        %v797 = vpop.f32.mrb[0].mxu0
        %v798 = vadd.f32 %v669, %v797
        %v799 = vpop.f32.mrb[0].mxu0
        %800 = vmatprep.mubr.f32.mxu0 0.0
        %801 = vmatmul.mubr.f32.gmra.mrb[0].mxu0 %v688
        %v802 = vpop.f32.mrb[0].mxu0
        %v803 = vadd.f32 %v669, %v802
        %v804 = vpop.f32.mrb[0].mxu0
        %805 = vmatprep.mubr.f32.mxu0 0.0
        %806 = vmatmul.mubr.f32.gmra.mrb[0].mxu0 %v691
        %v807 = vpop.f32.mrb[0].mxu0
        %v808 = vadd.f32 %v669, %v807
        %v809 = vpop.f32.mrb[0].mxu0
        %810 = vmatprep.mubr.f32.mxu0 0.0
        %811 = vmatmul.mubr.f32.gmra.mrb[0].mxu0 %v694
        %v812 = vpop.f32.mrb[0].mxu0
        %v813 = vadd.f32 %v669, %v812
        %v814 = vpop.f32.mrb[0].mxu0
        %815 = vmatprep.mubr.f32.mxu0 0.0
        %816 = vmatmul.mubr.f32.gmra.mrb[0].mxu0 %v697
        %v817 = vpop.f32.mrb[0].mxu0
        %v818 = vadd.f32 %v669, %v817
        %v819 = vpop.f32.mrb[0].mxu0
        %820 = vmatprep.mubr.f32.mxu0 0.0
        %821 = vmatmul.mubr.f32.gmra.mrb[0].mxu0 %v700
        %v822 = vpop.f32.mrb[0].mxu0
        %v823 = vadd.f32 %v669, %v822
        %v824 = vpop.f32.mrb[0].mxu0
        %825 = vmatprep.mubr.f32.mxu0 0.0
        %826 = vmatmul.mubr.f32.gmra.mrb[0].mxu0 %v703
        %v827 = vpop.f32.mrb[0].mxu0
        %v828 = vadd.f32 %v669, %v827
        %v829 = vpop.f32.mrb[0].mxu0
        %830 = vmatprep.mubr.f32.mxu0 0.0
        %831 = vmatmul.mubr.f32.gmra.mrb[0].mxu0 %v706
        %v832 = vpop.f32.mrb[0].mxu0
        %v833 = vadd.f32 %v669, %v832
        %v834 = vpop.f32.mrb[0].mxu0
        %835 = vdwg.mxu0
        %v836 = vmax.f32 %v778, 0.0
        %v837 = vmax.f32 %v783, 0.0
        %v838 = vmax.f32 %v788, 0.0
        %v839 = vmax.f32 %v793, 0.0
        %v840 = vmax.f32 %v798, 0.0
        %v841 = vmax.f32 %v803, 0.0
        %v842 = vmax.f32 %v808, 0.0
        %v843 = vmax.f32 %v813, 0.0
        %v844 = vmax.f32 %v818, 0.0
        %v845 = vmax.f32 %v823, 0.0
        %v846 = vmax.f32 %v828, 0.0
        %v847 = vmax.f32 %v833, 0.0
        %v848 = vadd.f32 %v836, %v839
        %v849 = vadd.f32 %v837, %v840
        %v850 = vadd.f32 %v838, %v841
        %v851 = vadd.f32 %v848, %v842
        %v852 = vadd.f32 %v849, %v843
        %v853 = vadd.f32 %v850, %v844
        %v854 = vadd.f32 %v851, %v845
        %v855 = vadd.f32 %v852, %v846
        %v856 = vadd.f32 %v853, %v847
        %v857 = vmul.f32 %v854, 0.25
        %v858 = vmul.f32 %v855, 0.25
        %v859 = vmul.f32 %v856, 0.25
        %v860 = vld [vmem:[%s9] sm:$0xff]
        %v861 = vld [vmem:[%s9 + $0x8] sm:$0xff]
        %v862 = vld [vmem:[%s9 + $0x10] sm:$0xff]
        %v863 = vld [vmem:[%s9 + $0x18] sm:$0xff]
        %vm864 = vcmask 261120
        %v866 = vsel %vm864, %v857, 0
        %v869 = vsel %vm864, %v858, 0
        %v872 = vsel %vm864, %v859, 0
        %874 = vmatprep.subr.mxu0 0.0
        %875 = vmatpush1.msra.mxu0 %v860
        %876 = vmatprep.subr.mxu0 0.0
        %877 = vmatpush1.msra.mxu0 %v861
        %878 = vmatprep.subr.mxu0 0.0
        %879 = vmatpush1.msra.mxu0 %v862
        %880 = vmatprep.subr.mxu0 0.0
        %881 = vmatpush1.msra.mxu0 %v863
        %882 = vmatprep.subr.mxu0 0.0
        %883 = vmatpush1.msra.mxu0 0.0
        %884 = vmatprep.subr.mxu0 0.0
        %885 = vmatpush1.msra.mxu0 0.0
        %886 = vmatprep.subr.mxu0 0.0
        %887 = vmatpush1.msra.mxu0 0.0
        %888 = vmatprep.subr.mxu0 0.0
        %889 = vmatpush1.msra.mxu0 0.0
        %890 = vmatprep.subr.mxu0 0.0
        %891 = vmatpush1.msra.mxu0 0.0
        %892 = vmatprep.subr.mxu0 0.0
        %893 = vmatpush1.msra.mxu0 0.0
        %894 = vmatprep.subr.mxu0 0.0
        %895 = vmatpush1.msra.mxu0 0.0
        %896 = vmatprep.subr.mxu0 0.0
        %897 = vmatpush1.msra.mxu0 0.0
        %898 = vmatprep.subr.mxu0 0.0
        %899 = vmatpush1.msra.mxu0 0.0
        %900 = vmatprep.subr.mxu0 0.0
        %901 = vmatpush1.msra.mxu0 0.0
        %902 = vmatprep.subr.mxu0 0.0
        %903 = vmatpush1.msra.mxu0 0.0
        %904 = vmatprep.subr.mxu0 0.0
        %905 = vmatpush1.msra.mxu0 0.0
        %906 = vmatprep.subr.mxu0 0.0
        %907 = vmatpush1.msra.mxu0 0.0
        %908 = vmatprep.subr.mxu0 0.0
        %909 = vmatpush1.msra.mxu0 0.0
        %910 = vmatprep.subr.mxu0 0.0
        %911 = vmatpush1.msra.mxu0 0.0
        %912 = vmatprep.subr.mxu0 0.0
        %913 = vmatpush1.msra.mxu0 0.0
        %914 = vmatprep.subr.mxu0 0.0
        %915 = vmatpush1.msra.mxu0 0.0
        %916 = vmatprep.subr.mxu0 0.0
        %917 = vmatpush1.msra.mxu0 0.0
        %918 = vmatprep.subr.mxu0 0.0
        %919 = vmatpush1.msra.mxu0 0.0
        %920 = vmatprep.subr.mxu0 0.0
        %921 = vmatpush1.msra.mxu0 0.0
        %922 = vmatprep.subr.mxu0 0.0
        %923 = vmatpush1.msra.mxu0 0.0
        %924 = vmatprep.subr.mxu0 0.0
        %925 = vmatpush1.msra.mxu0 0.0
        %926 = vmatprep.subr.mxu0 0.0
        %927 = vmatpush1.msra.mxu0 0.0
        %928 = vmatprep.subr.mxu0 0.0
        %929 = vmatpush1.msra.mxu0 0.0
        %930 = vmatprep.subr.mxu0 0.0
        %931 = vmatpush1.msra.mxu0 0.0
        %932 = vmatprep.subr.mxu0 0.0
        %933 = vmatpush1.msra.mxu0 0.0
        %934 = vmatprep.subr.mxu0 0.0
        %935 = vmatpush1.msra.mxu0 0.0
        %936 = vmatprep.subr.mxu0 0.0
        %937 = vmatpush1.msra.mxu0 0.0
        %938 = vmatprep.mubr.f32.mxu0 0.0
        %939 = vmatmul.mubr.f32.gmra.mrb[0].mxu0 %v866
        %v940 = vpop.f32.mrb[0].mxu0
        %v941 = vadd.f32 0.0, %v940
        %v942 = vpop.f32.mrb[0].mxu0
        %943 = vmatprep.mubr.f32.mxu0 0.0
        %944 = vmatmul.mubr.f32.gmra.mrb[0].mxu0 %v869
        %v945 = vpop.f32.mrb[0].mxu0
        %v946 = vadd.f32 0.0, %v945
        %v947 = vpop.f32.mrb[0].mxu0
        %948 = vmatprep.mubr.f32.mxu0 0.0
        %949 = vmatmul.mubr.f32.gmra.mrb[0].mxu0 %v872
        %v950 = vpop.f32.mrb[0].mxu0
        %v951 = vadd.f32 0.0, %v950
        %v952 = vpop.f32.mrb[0].mxu0
        %953 = vdwg.mxu0
        %v954 = vld [vmem:[%s10] sm:$0xff]
        %v955 = vld [vmem:[%s10 + $0x8] sm:$0xff]
        %v956 = vld [vmem:[%s10 + $0x10] sm:$0xff]
        %v957 = vld [vmem:[%s10 + $0x18] sm:$0xff]
        %v959 = vsel %vm864, %v648, 0
        %v962 = vsel %vm864, %v649, 0
        %v965 = vsel %vm864, %v650, 0
        %967 = vmatprep.subr.mxu0 0.0
        %968 = vmatpush1.msra.mxu0 %v954
        %969 = vmatprep.subr.mxu0 0.0
        %970 = vmatpush1.msra.mxu0 %v955
        %971 = vmatprep.subr.mxu0 0.0
        %972 = vmatpush1.msra.mxu0 %v956
        %973 = vmatprep.subr.mxu0 0.0
        %974 = vmatpush1.msra.mxu0 %v957
        %975 = vmatprep.subr.mxu0 0.0
        %976 = vmatpush1.msra.mxu0 0.0
        %977 = vmatprep.subr.mxu0 0.0
        %978 = vmatpush1.msra.mxu0 0.0
        %979 = vmatprep.subr.mxu0 0.0
        %980 = vmatpush1.msra.mxu0 0.0
        %981 = vmatprep.subr.mxu0 0.0
        %982 = vmatpush1.msra.mxu0 0.0
        %983 = vmatprep.subr.mxu0 0.0
        %984 = vmatpush1.msra.mxu0 0.0
        %985 = vmatprep.subr.mxu0 0.0
        %986 = vmatpush1.msra.mxu0 0.0
        %987 = vmatprep.subr.mxu0 0.0
        %988 = vmatpush1.msra.mxu0 0.0
        %989 = vmatprep.subr.mxu0 0.0
        %990 = vmatpush1.msra.mxu0 0.0
        %991 = vmatprep.subr.mxu0 0.0
        %992 = vmatpush1.msra.mxu0 0.0
        %993 = vmatprep.subr.mxu0 0.0
        %994 = vmatpush1.msra.mxu0 0.0
        %995 = vmatprep.subr.mxu0 0.0
        %996 = vmatpush1.msra.mxu0 0.0
        %997 = vmatprep.subr.mxu0 0.0
        %998 = vmatpush1.msra.mxu0 0.0
        %999 = vmatprep.subr.mxu0 0.0
        %1000 = vmatpush1.msra.mxu0 0.0
        %1001 = vmatprep.subr.mxu0 0.0
        %1002 = vmatpush1.msra.mxu0 0.0
        %1003 = vmatprep.subr.mxu0 0.0
        %1004 = vmatpush1.msra.mxu0 0.0
        %1005 = vmatprep.subr.mxu0 0.0
        %1006 = vmatpush1.msra.mxu0 0.0
        %1007 = vmatprep.subr.mxu0 0.0
        %1008 = vmatpush1.msra.mxu0 0.0
        %1009 = vmatprep.subr.mxu0 0.0
        %1010 = vmatpush1.msra.mxu0 0.0
        %1011 = vmatprep.subr.mxu0 0.0
        %1012 = vmatpush1.msra.mxu0 0.0
        %1013 = vmatprep.subr.mxu0 0.0
        %1014 = vmatpush1.msra.mxu0 0.0
        %1015 = vmatprep.subr.mxu0 0.0
        %1016 = vmatpush1.msra.mxu0 0.0
        %1017 = vmatprep.subr.mxu0 0.0
        %1018 = vmatpush1.msra.mxu0 0.0
        %1019 = vmatprep.subr.mxu0 0.0
        %1020 = vmatpush1.msra.mxu0 0.0
        %1021 = vmatprep.subr.mxu0 0.0
        %1022 = vmatpush1.msra.mxu0 0.0
        %1023 = vmatprep.subr.mxu0 0.0
        %1024 = vmatpush1.msra.mxu0 0.0
        %1025 = vmatprep.subr.mxu0 0.0
        %1026 = vmatpush1.msra.mxu0 0.0
        %1027 = vmatprep.subr.mxu0 0.0
        %1028 = vmatpush1.msra.mxu0 0.0
        %1029 = vmatprep.subr.mxu0 0.0
        %1030 = vmatpush1.msra.mxu0 0.0
        %1031 = vmatprep.mubr.f32.mxu0 0.0
        %1032 = vmatmul.mubr.f32.gmra.mrb[0].mxu0 %v959
        %v1033 = vpop.f32.mrb[0].mxu0
        %v1034 = vadd.f32 0.0, %v1033
        %v1035 = vpop.f32.mrb[0].mxu0
        %1036 = vmatprep.mubr.f32.mxu0 0.0
        %1037 = vmatmul.mubr.f32.gmra.mrb[0].mxu0 %v962
        %v1038 = vpop.f32.mrb[0].mxu0
        %v1039 = vadd.f32 0.0, %v1038
        %v1040 = vpop.f32.mrb[0].mxu0
        %1041 = vmatprep.mubr.f32.mxu0 0.0
        %1042 = vmatmul.mubr.f32.gmra.mrb[0].mxu0 %v965
        %v1043 = vpop.f32.mrb[0].mxu0
        %v1044 = vadd.f32 0.0, %v1043
        %v1045 = vpop.f32.mrb[0].mxu0
        %1046 = vdwg.mxu0
        %v1048 = vsel %vm864, %v941, 0
        %v1051 = vsel %vm864, %v1034, 0
        %1053 = vmatprep.subr.mxu0 0.0
        %1054 = vmatpush1.xpose.msra.mxu0 %v1051
        %1055 = vmatprep.subr.mxu0 0.0
        %1056 = vmatpush1.xpose.msra.mxu0 0.0
        %1057 = vmatprep.subr.mxu0 0.0
        %1058 = vmatpush1.xpose.msra.mxu0 0.0
        %1059 = vmatprep.subr.mxu0 0.0
        %1060 = vmatpush1.xpose.msra.mxu0 0.0
        %1061 = vmatprep.subr.mxu0 0.0
        %1062 = vmatpush1.xpose.msra.mxu0 0.0
        %1063 = vmatprep.subr.mxu0 0.0
        %1064 = vmatpush1.xpose.msra.mxu0 0.0
        %1065 = vmatprep.subr.mxu0 0.0
        %1066 = vmatpush1.xpose.msra.mxu0 0.0
        %1067 = vmatprep.subr.mxu0 0.0
        %1068 = vmatpush1.xpose.msra.mxu0 0.0
        %1069 = vmatprep.subr.mxu0 0.0
        %1070 = vmatpush1.xpose.msra.mxu0 0.0
        %1071 = vmatprep.subr.mxu0 0.0
        %1072 = vmatpush1.xpose.msra.mxu0 0.0
        %1073 = vmatprep.subr.mxu0 0.0
        %1074 = vmatpush1.xpose.msra.mxu0 0.0
        %1075 = vmatprep.subr.mxu0 0.0
        %1076 = vmatpush1.xpose.msra.mxu0 0.0
        %1077 = vmatprep.subr.mxu0 0.0
        %1078 = vmatpush1.xpose.msra.mxu0 0.0
        %1079 = vmatprep.subr.mxu0 0.0
        %1080 = vmatpush1.xpose.msra.mxu0 0.0
        %1081 = vmatprep.subr.mxu0 0.0
        %1082 = vmatpush1.xpose.msra.mxu0 0.0
        %1083 = vmatprep.subr.mxu0 0.0
        %1084 = vmatpush1.xpose.msra.mxu0 0.0
        %1085 = vmatprep.subr.mxu0 0.0
        %1086 = vmatpush1.xpose.msra.mxu0 0.0
        %1087 = vmatprep.subr.mxu0 0.0
        %1088 = vmatpush1.xpose.msra.mxu0 0.0
        %1089 = vmatprep.subr.mxu0 0.0
        %1090 = vmatpush1.xpose.msra.mxu0 0.0
        %1091 = vmatprep.subr.mxu0 0.0
        %1092 = vmatpush1.xpose.msra.mxu0 0.0
        %1093 = vmatprep.subr.mxu0 0.0
        %1094 = vmatpush1.xpose.msra.mxu0 0.0
        %1095 = vmatprep.subr.mxu0 0.0
        %1096 = vmatpush1.xpose.msra.mxu0 0.0
        %1097 = vmatprep.subr.mxu0 0.0
        %1098 = vmatpush1.xpose.msra.mxu0 0.0
        %1099 = vmatprep.subr.mxu0 0.0
        %1100 = vmatpush1.xpose.msra.mxu0 0.0
        %1101 = vmatprep.subr.mxu0 0.0
        %1102 = vmatpush1.xpose.msra.mxu0 0.0
        %1103 = vmatprep.subr.mxu0 0.0
        %1104 = vmatpush1.xpose.msra.mxu0 0.0
        %1105 = vmatprep.subr.mxu0 0.0
        %1106 = vmatpush1.xpose.msra.mxu0 0.0
        %1107 = vmatprep.subr.mxu0 0.0
        %1108 = vmatpush1.xpose.msra.mxu0 0.0
        %1109 = vmatprep.subr.mxu0 0.0
        %1110 = vmatpush1.xpose.msra.mxu0 0.0
        %1111 = vmatprep.subr.mxu0 0.0
        %1112 = vmatpush1.xpose.msra.mxu0 0.0
        %1113 = vmatprep.subr.mxu0 0.0
        %1114 = vmatpush1.xpose.msra.mxu0 0.0
        %1115 = vmatprep.subr.mxu0 0.0
        %1116 = vmatpush1.xpose.msra.mxu0 0.0
        %1117 = vmatprep.mubr.f32.mxu0 0.0
        %1118 = vmatmul.mubr.f32.gmra.mrb[0].mxu0 %v1048
        %v1119 = vpop.f32.mrb[0].mxu0
        %v1120 = vadd.f32 0.0, %v1119
        %v1121 = vpop.f32.mrb[0].mxu0
        %1122 = vdwg.mxu0
        %v1124 = vsel %vm864, %v946, 0
        %v1127 = vsel %vm864, %v1039, 0
        %1129 = vmatprep.subr.mxu0 0.0
        %1130 = vmatpush1.xpose.msra.mxu0 %v1127
        %1131 = vmatprep.subr.mxu0 0.0
        %1132 = vmatpush1.xpose.msra.mxu0 0.0
        %1133 = vmatprep.subr.mxu0 0.0
        %1134 = vmatpush1.xpose.msra.mxu0 0.0
        %1135 = vmatprep.subr.mxu0 0.0
        %1136 = vmatpush1.xpose.msra.mxu0 0.0
        %1137 = vmatprep.subr.mxu0 0.0
        %1138 = vmatpush1.xpose.msra.mxu0 0.0
        %1139 = vmatprep.subr.mxu0 0.0
        %1140 = vmatpush1.xpose.msra.mxu0 0.0
        %1141 = vmatprep.subr.mxu0 0.0
        %1142 = vmatpush1.xpose.msra.mxu0 0.0
        %1143 = vmatprep.subr.mxu0 0.0
        %1144 = vmatpush1.xpose.msra.mxu0 0.0
        %1145 = vmatprep.subr.mxu0 0.0
        %1146 = vmatpush1.xpose.msra.mxu0 0.0
        %1147 = vmatprep.subr.mxu0 0.0
        %1148 = vmatpush1.xpose.msra.mxu0 0.0
        %1149 = vmatprep.subr.mxu0 0.0
        %1150 = vmatpush1.xpose.msra.mxu0 0.0
        %1151 = vmatprep.subr.mxu0 0.0
        %1152 = vmatpush1.xpose.msra.mxu0 0.0
        %1153 = vmatprep.subr.mxu0 0.0
        %1154 = vmatpush1.xpose.msra.mxu0 0.0
        %1155 = vmatprep.subr.mxu0 0.0
        %1156 = vmatpush1.xpose.msra.mxu0 0.0
        %1157 = vmatprep.subr.mxu0 0.0
        %1158 = vmatpush1.xpose.msra.mxu0 0.0
        %1159 = vmatprep.subr.mxu0 0.0
        %1160 = vmatpush1.xpose.msra.mxu0 0.0
        %1161 = vmatprep.subr.mxu0 0.0
        %1162 = vmatpush1.xpose.msra.mxu0 0.0
        %1163 = vmatprep.subr.mxu0 0.0
        %1164 = vmatpush1.xpose.msra.mxu0 0.0
        %1165 = vmatprep.subr.mxu0 0.0
        %1166 = vmatpush1.xpose.msra.mxu0 0.0
        %1167 = vmatprep.subr.mxu0 0.0
        %1168 = vmatpush1.xpose.msra.mxu0 0.0
        %1169 = vmatprep.subr.mxu0 0.0
        %1170 = vmatpush1.xpose.msra.mxu0 0.0
        %1171 = vmatprep.subr.mxu0 0.0
        %1172 = vmatpush1.xpose.msra.mxu0 0.0
        %1173 = vmatprep.subr.mxu0 0.0
        %1174 = vmatpush1.xpose.msra.mxu0 0.0
        %1175 = vmatprep.subr.mxu0 0.0
        %1176 = vmatpush1.xpose.msra.mxu0 0.0
        %1177 = vmatprep.subr.mxu0 0.0
        %1178 = vmatpush1.xpose.msra.mxu0 0.0
        %1179 = vmatprep.subr.mxu0 0.0
        %1180 = vmatpush1.xpose.msra.mxu0 0.0
        %1181 = vmatprep.subr.mxu0 0.0
        %1182 = vmatpush1.xpose.msra.mxu0 0.0
        %1183 = vmatprep.subr.mxu0 0.0
        %1184 = vmatpush1.xpose.msra.mxu0 0.0
        %1185 = vmatprep.subr.mxu0 0.0
        %1186 = vmatpush1.xpose.msra.mxu0 0.0
        %1187 = vmatprep.subr.mxu0 0.0
        %1188 = vmatpush1.xpose.msra.mxu0 0.0
        %1189 = vmatprep.subr.mxu0 0.0
        %1190 = vmatpush1.xpose.msra.mxu0 0.0
        %1191 = vmatprep.subr.mxu0 0.0
        %1192 = vmatpush1.xpose.msra.mxu0 0.0
        %1193 = vmatprep.mubr.f32.mxu0 0.0
        %1194 = vmatmul.mubr.f32.gmra.mrb[0].mxu0 %v1124
        %v1195 = vpop.f32.mrb[0].mxu0
        %v1196 = vadd.f32 0.0, %v1195
        %v1197 = vpop.f32.mrb[0].mxu0
        %1198 = vdwg.mxu0
        %v1200 = vsel %vm864, %v951, 0
        %v1203 = vsel %vm864, %v1044, 0
        %1205 = vmatprep.subr.mxu0 0.0
        %1206 = vmatpush1.xpose.msra.mxu0 %v1203
        %1207 = vmatprep.subr.mxu0 0.0
        %1208 = vmatpush1.xpose.msra.mxu0 0.0
        %1209 = vmatprep.subr.mxu0 0.0
        %1210 = vmatpush1.xpose.msra.mxu0 0.0
        %1211 = vmatprep.subr.mxu0 0.0
        %1212 = vmatpush1.xpose.msra.mxu0 0.0
        %1213 = vmatprep.subr.mxu0 0.0
        %1214 = vmatpush1.xpose.msra.mxu0 0.0
        %1215 = vmatprep.subr.mxu0 0.0
        %1216 = vmatpush1.xpose.msra.mxu0 0.0
        %1217 = vmatprep.subr.mxu0 0.0
        %1218 = vmatpush1.xpose.msra.mxu0 0.0
        %1219 = vmatprep.subr.mxu0 0.0
        %1220 = vmatpush1.xpose.msra.mxu0 0.0
        %1221 = vmatprep.subr.mxu0 0.0
        %1222 = vmatpush1.xpose.msra.mxu0 0.0
        %1223 = vmatprep.subr.mxu0 0.0
        %1224 = vmatpush1.xpose.msra.mxu0 0.0
        %1225 = vmatprep.subr.mxu0 0.0
        %1226 = vmatpush1.xpose.msra.mxu0 0.0
        %1227 = vmatprep.subr.mxu0 0.0
        %1228 = vmatpush1.xpose.msra.mxu0 0.0
        %1229 = vmatprep.subr.mxu0 0.0
        %1230 = vmatpush1.xpose.msra.mxu0 0.0
        %1231 = vmatprep.subr.mxu0 0.0
        %1232 = vmatpush1.xpose.msra.mxu0 0.0
        %1233 = vmatprep.subr.mxu0 0.0
        %1234 = vmatpush1.xpose.msra.mxu0 0.0
        %1235 = vmatprep.subr.mxu0 0.0
        %1236 = vmatpush1.xpose.msra.mxu0 0.0
        %1237 = vmatprep.subr.mxu0 0.0
        %1238 = vmatpush1.xpose.msra.mxu0 0.0
        %1239 = vmatprep.subr.mxu0 0.0
        %1240 = vmatpush1.xpose.msra.mxu0 0.0
        %1241 = vmatprep.subr.mxu0 0.0
        %1242 = vmatpush1.xpose.msra.mxu0 0.0
        %1243 = vmatprep.subr.mxu0 0.0
        %1244 = vmatpush1.xpose.msra.mxu0 0.0
        %1245 = vmatprep.subr.mxu0 0.0
        %1246 = vmatpush1.xpose.msra.mxu0 0.0
        %1247 = vmatprep.subr.mxu0 0.0
        %1248 = vmatpush1.xpose.msra.mxu0 0.0
        %1249 = vmatprep.subr.mxu0 0.0
        %1250 = vmatpush1.xpose.msra.mxu0 0.0
        %1251 = vmatprep.subr.mxu0 0.0
        %1252 = vmatpush1.xpose.msra.mxu0 0.0
        %1253 = vmatprep.subr.mxu0 0.0
        %1254 = vmatpush1.xpose.msra.mxu0 0.0
        %1255 = vmatprep.subr.mxu0 0.0
        %1256 = vmatpush1.xpose.msra.mxu0 0.0
        %1257 = vmatprep.subr.mxu0 0.0
        %1258 = vmatpush1.xpose.msra.mxu0 0.0
        %1259 = vmatprep.subr.mxu0 0.0
        %1260 = vmatpush1.xpose.msra.mxu0 0.0
        %1261 = vmatprep.subr.mxu0 0.0
        %1262 = vmatpush1.xpose.msra.mxu0 0.0
        %1263 = vmatprep.subr.mxu0 0.0
        %1264 = vmatpush1.xpose.msra.mxu0 0.0
        %1265 = vmatprep.subr.mxu0 0.0
        %1266 = vmatpush1.xpose.msra.mxu0 0.0
        %1267 = vmatprep.subr.mxu0 0.0
        %1268 = vmatpush1.xpose.msra.mxu0 0.0
        %1269 = vmatprep.mubr.f32.mxu0 0.0
        %1270 = vmatmul.mubr.f32.gmra.mrb[0].mxu0 %v1200
        %v1271 = vpop.f32.mrb[0].mxu0
        %v1272 = vadd.f32 0.0, %v1271
        %v1273 = vpop.f32.mrb[0].mxu0
        %1274 = vdwg.mxu0
        %v1275 = vmul.f32 %v1120, 0.17677669
        %v1276 = vmul.f32 %v1196, 0.17677669
        %v1277 = vmul.f32 %v1272, 0.17677669
        %v1278 = vld [vmem:[%s514] sm:$0xff]
        %v1279 = vld [vmem:[%s514 + $0x8] sm:$0xff]
        %v1280 = vld [vmem:[%s514 + $0x10] sm:$0xff]
        %vm1281 = vcmp.gt.f32.partialorder %v1278, 0.5
        %vm1282 = vcmp.gt.f32.partialorder %v1279, 0.5
        %vm1283 = vcmp.gt.f32.partialorder %v1280, 0.5
        %v1284 = vsel %vm1281, %v1275, -1e+09
        %v1285 = vsel %vm1282, %v1276, -1e+09
        %v1286 = vsel %vm1283, %v1277, -1e+09
        %vm1287 = vcmask 64512
        %v1288 = vsel %vm1287, %v1284, -inf
        %1289 = vmax.xlane.f32.xlu0 %v1288
        %v1290 = vpop.xlane.xlu0 %1289
        %v1291 = vsel %vm1287, %v1285, -inf
        %1292 = vmax.xlane.f32.xlu0 %v1291
        %v1293 = vpop.xlane.xlu0 %1292
        %v1294 = vsel %vm1287, %v1286, -inf
        %1295 = vmax.xlane.f32.xlu0 %v1294
        %v1296 = vpop.xlane.xlu0 %1295
        %v1297 = vsub.f32 %v1284, %v1290
        %v1298 = vsub.f32 %v1285, %v1293
        %v1299 = vsub.f32 %v1286, %v1296
        %v1300 = vmul.f32 %v1297, 1.442695
        %v1301 = vpow.pop %v1300
        %v1302 = vmul.f32 %v1298, 1.442695
        %v1303 = vpow.pop %v1302
        %v1304 = vmul.f32 %v1299, 1.442695
        %v1305 = vpow.pop %v1304
        %v1306 = vsel %vm1287, %v1301, 0.0
        %1307 = vadd.xlane.f32.xlu0 %v1306
        %v1308 = vpop.xlane.xlu0 %1307
        %v1309 = vsel %vm1287, %v1303, 0.0
        %1310 = vadd.xlane.f32.xlu0 %v1309
        %v1311 = vpop.xlane.xlu0 %1310
        %v1312 = vsel %vm1287, %v1305, 0.0
        %1313 = vadd.xlane.f32.xlu0 %v1312
        %v1314 = vpop.xlane.xlu0 %1313
        %v1315 = vrcp.pop %v1308
        %v1316 = vrcp.pop %v1311
        %v1317 = vrcp.pop %v1314
        %v1318 = vmul.f32 %v1301, %v1315
        %v1319 = vmul.f32 %v1303, %v1316
        %v1320 = vmul.f32 %v1305, %v1317
        %1321 = vrot.lane.b32.xlu0 %v1034, 96
        %v1322 = vpop.permute.xlu0 %1321
        %v1325 = vsel %vm1287, %v1318, 0
        %1327 = vmatprep.subr.mxu0 0.0
        %1328 = vmatpush1.msra.mxu0 %v1322
        %1329 = vmatprep.subr.mxu0 0.0
        %1330 = vmatpush1.msra.mxu0 0.0
        %1331 = vmatprep.subr.mxu0 0.0
        %1332 = vmatpush1.msra.mxu0 0.0
        %1333 = vmatprep.subr.mxu0 0.0
        %1334 = vmatpush1.msra.mxu0 0.0
        %1335 = vmatprep.subr.mxu0 0.0
        %1336 = vmatpush1.msra.mxu0 0.0
        %1337 = vmatprep.subr.mxu0 0.0
        %1338 = vmatpush1.msra.mxu0 0.0
        %1339 = vmatprep.subr.mxu0 0.0
        %1340 = vmatpush1.msra.mxu0 0.0
        %1341 = vmatprep.subr.mxu0 0.0
        %1342 = vmatpush1.msra.mxu0 0.0
        %1343 = vmatprep.subr.mxu0 0.0
        %1344 = vmatpush1.msra.mxu0 0.0
        %1345 = vmatprep.subr.mxu0 0.0
        %1346 = vmatpush1.msra.mxu0 0.0
        %1347 = vmatprep.subr.mxu0 0.0
        %1348 = vmatpush1.msra.mxu0 0.0
        %1349 = vmatprep.subr.mxu0 0.0
        %1350 = vmatpush1.msra.mxu0 0.0
        %1351 = vmatprep.subr.mxu0 0.0
        %1352 = vmatpush1.msra.mxu0 0.0
        %1353 = vmatprep.subr.mxu0 0.0
        %1354 = vmatpush1.msra.mxu0 0.0
        %1355 = vmatprep.subr.mxu0 0.0
        %1356 = vmatpush1.msra.mxu0 0.0
        %1357 = vmatprep.subr.mxu0 0.0
        %1358 = vmatpush1.msra.mxu0 0.0
        %1359 = vmatprep.subr.mxu0 0.0
        %1360 = vmatpush1.msra.mxu0 0.0
        %1361 = vmatprep.subr.mxu0 0.0
        %1362 = vmatpush1.msra.mxu0 0.0
        %1363 = vmatprep.subr.mxu0 0.0
        %1364 = vmatpush1.msra.mxu0 0.0
        %1365 = vmatprep.subr.mxu0 0.0
        %1366 = vmatpush1.msra.mxu0 0.0
        %1367 = vmatprep.subr.mxu0 0.0
        %1368 = vmatpush1.msra.mxu0 0.0
        %1369 = vmatprep.subr.mxu0 0.0
        %1370 = vmatpush1.msra.mxu0 0.0
        %1371 = vmatprep.subr.mxu0 0.0
        %1372 = vmatpush1.msra.mxu0 0.0
        %1373 = vmatprep.subr.mxu0 0.0
        %1374 = vmatpush1.msra.mxu0 0.0
        %1375 = vmatprep.subr.mxu0 0.0
        %1376 = vmatpush1.msra.mxu0 0.0
        %1377 = vmatprep.subr.mxu0 0.0
        %1378 = vmatpush1.msra.mxu0 0.0
        %1379 = vmatprep.subr.mxu0 0.0
        %1380 = vmatpush1.msra.mxu0 0.0
        %1381 = vmatprep.subr.mxu0 0.0
        %1382 = vmatpush1.msra.mxu0 0.0
        %1383 = vmatprep.subr.mxu0 0.0
        %1384 = vmatpush1.msra.mxu0 0.0
        %1385 = vmatprep.subr.mxu0 0.0
        %1386 = vmatpush1.msra.mxu0 0.0
        %1387 = vmatprep.subr.mxu0 0.0
        %1388 = vmatpush1.msra.mxu0 0.0
        %1389 = vmatprep.subr.mxu0 0.0
        %1390 = vmatpush1.msra.mxu0 0.0
        %1391 = vmatprep.mubr.f32.mxu0 0.0
        %1392 = vmatmul.mubr.f32.gmra.mrb[0].mxu0 %v1325
        %v1393 = vpop.f32.mrb[0].mxu0
        %v1394 = vadd.f32 0.0, %v1393
        %v1395 = vpop.f32.mrb[0].mxu0
        %1396 = vdwg.mxu0
        %1397 = vrot.lane.b32.xlu0 %v1039, 96
        %v1398 = vpop.permute.xlu0 %1397
        %v1401 = vsel %vm1287, %v1319, 0
        %1403 = vmatprep.subr.mxu0 0.0
        %1404 = vmatpush1.msra.mxu0 %v1398
        %1405 = vmatprep.subr.mxu0 0.0
        %1406 = vmatpush1.msra.mxu0 0.0
        %1407 = vmatprep.subr.mxu0 0.0
        %1408 = vmatpush1.msra.mxu0 0.0
        %1409 = vmatprep.subr.mxu0 0.0
        %1410 = vmatpush1.msra.mxu0 0.0
        %1411 = vmatprep.subr.mxu0 0.0
        %1412 = vmatpush1.msra.mxu0 0.0
        %1413 = vmatprep.subr.mxu0 0.0
        %1414 = vmatpush1.msra.mxu0 0.0
        %1415 = vmatprep.subr.mxu0 0.0
        %1416 = vmatpush1.msra.mxu0 0.0
        %1417 = vmatprep.subr.mxu0 0.0
        %1418 = vmatpush1.msra.mxu0 0.0
        %1419 = vmatprep.subr.mxu0 0.0
        %1420 = vmatpush1.msra.mxu0 0.0
        %1421 = vmatprep.subr.mxu0 0.0
        %1422 = vmatpush1.msra.mxu0 0.0
        %1423 = vmatprep.subr.mxu0 0.0
        %1424 = vmatpush1.msra.mxu0 0.0
        %1425 = vmatprep.subr.mxu0 0.0
        %1426 = vmatpush1.msra.mxu0 0.0
        %1427 = vmatprep.subr.mxu0 0.0
        %1428 = vmatpush1.msra.mxu0 0.0
        %1429 = vmatprep.subr.mxu0 0.0
        %1430 = vmatpush1.msra.mxu0 0.0
        %1431 = vmatprep.subr.mxu0 0.0
        %1432 = vmatpush1.msra.mxu0 0.0
        %1433 = vmatprep.subr.mxu0 0.0
        %1434 = vmatpush1.msra.mxu0 0.0
        %1435 = vmatprep.subr.mxu0 0.0
        %1436 = vmatpush1.msra.mxu0 0.0
        %1437 = vmatprep.subr.mxu0 0.0
        %1438 = vmatpush1.msra.mxu0 0.0
        %1439 = vmatprep.subr.mxu0 0.0
        %1440 = vmatpush1.msra.mxu0 0.0
        %1441 = vmatprep.subr.mxu0 0.0
        %1442 = vmatpush1.msra.mxu0 0.0
        %1443 = vmatprep.subr.mxu0 0.0
        %1444 = vmatpush1.msra.mxu0 0.0
        %1445 = vmatprep.subr.mxu0 0.0
        %1446 = vmatpush1.msra.mxu0 0.0
        %1447 = vmatprep.subr.mxu0 0.0
        %1448 = vmatpush1.msra.mxu0 0.0
        %1449 = vmatprep.subr.mxu0 0.0
        %1450 = vmatpush1.msra.mxu0 0.0
        %1451 = vmatprep.subr.mxu0 0.0
        %1452 = vmatpush1.msra.mxu0 0.0
        %1453 = vmatprep.subr.mxu0 0.0
        %1454 = vmatpush1.msra.mxu0 0.0
        %1455 = vmatprep.subr.mxu0 0.0
        %1456 = vmatpush1.msra.mxu0 0.0
        %1457 = vmatprep.subr.mxu0 0.0
        %1458 = vmatpush1.msra.mxu0 0.0
        %1459 = vmatprep.subr.mxu0 0.0
        %1460 = vmatpush1.msra.mxu0 0.0
        %1461 = vmatprep.subr.mxu0 0.0
        %1462 = vmatpush1.msra.mxu0 0.0
        %1463 = vmatprep.subr.mxu0 0.0
        %1464 = vmatpush1.msra.mxu0 0.0
        %1465 = vmatprep.subr.mxu0 0.0
        %1466 = vmatpush1.msra.mxu0 0.0
        %1467 = vmatprep.mubr.f32.mxu0 0.0
        %1468 = vmatmul.mubr.f32.gmra.mrb[0].mxu0 %v1401
        %v1469 = vpop.f32.mrb[0].mxu0
        %v1470 = vadd.f32 0.0, %v1469
        %v1471 = vpop.f32.mrb[0].mxu0
        %1472 = vdwg.mxu0
        %1473 = vrot.lane.b32.xlu0 %v1044, 96
        %v1474 = vpop.permute.xlu0 %1473
        %v1477 = vsel %vm1287, %v1320, 0
        %1479 = vmatprep.subr.mxu0 0.0
        %1480 = vmatpush1.msra.mxu0 %v1474
        %1481 = vmatprep.subr.mxu0 0.0
        %1482 = vmatpush1.msra.mxu0 0.0
        %1483 = vmatprep.subr.mxu0 0.0
        %1484 = vmatpush1.msra.mxu0 0.0
        %1485 = vmatprep.subr.mxu0 0.0
        %1486 = vmatpush1.msra.mxu0 0.0
        %1487 = vmatprep.subr.mxu0 0.0
        %1488 = vmatpush1.msra.mxu0 0.0
        %1489 = vmatprep.subr.mxu0 0.0
        %1490 = vmatpush1.msra.mxu0 0.0
        %1491 = vmatprep.subr.mxu0 0.0
        %1492 = vmatpush1.msra.mxu0 0.0
        %1493 = vmatprep.subr.mxu0 0.0
        %1494 = vmatpush1.msra.mxu0 0.0
        %1495 = vmatprep.subr.mxu0 0.0
        %1496 = vmatpush1.msra.mxu0 0.0
        %1497 = vmatprep.subr.mxu0 0.0
        %1498 = vmatpush1.msra.mxu0 0.0
        %1499 = vmatprep.subr.mxu0 0.0
        %1500 = vmatpush1.msra.mxu0 0.0
        %1501 = vmatprep.subr.mxu0 0.0
        %1502 = vmatpush1.msra.mxu0 0.0
        %1503 = vmatprep.subr.mxu0 0.0
        %1504 = vmatpush1.msra.mxu0 0.0
        %1505 = vmatprep.subr.mxu0 0.0
        %1506 = vmatpush1.msra.mxu0 0.0
        %1507 = vmatprep.subr.mxu0 0.0
        %1508 = vmatpush1.msra.mxu0 0.0
        %1509 = vmatprep.subr.mxu0 0.0
        %1510 = vmatpush1.msra.mxu0 0.0
        %1511 = vmatprep.subr.mxu0 0.0
        %1512 = vmatpush1.msra.mxu0 0.0
        %1513 = vmatprep.subr.mxu0 0.0
        %1514 = vmatpush1.msra.mxu0 0.0
        %1515 = vmatprep.subr.mxu0 0.0
        %1516 = vmatpush1.msra.mxu0 0.0
        %1517 = vmatprep.subr.mxu0 0.0
        %1518 = vmatpush1.msra.mxu0 0.0
        %1519 = vmatprep.subr.mxu0 0.0
        %1520 = vmatpush1.msra.mxu0 0.0
        %1521 = vmatprep.subr.mxu0 0.0
        %1522 = vmatpush1.msra.mxu0 0.0
        %1523 = vmatprep.subr.mxu0 0.0
        %1524 = vmatpush1.msra.mxu0 0.0
        %1525 = vmatprep.subr.mxu0 0.0
        %1526 = vmatpush1.msra.mxu0 0.0
        %1527 = vmatprep.subr.mxu0 0.0
        %1528 = vmatpush1.msra.mxu0 0.0
        %1529 = vmatprep.subr.mxu0 0.0
        %1530 = vmatpush1.msra.mxu0 0.0
        %1531 = vmatprep.subr.mxu0 0.0
        %1532 = vmatpush1.msra.mxu0 0.0
        %1533 = vmatprep.subr.mxu0 0.0
        %1534 = vmatpush1.msra.mxu0 0.0
        %1535 = vmatprep.subr.mxu0 0.0
        %1536 = vmatpush1.msra.mxu0 0.0
        %1537 = vmatprep.subr.mxu0 0.0
        %1538 = vmatpush1.msra.mxu0 0.0
        %1539 = vmatprep.subr.mxu0 0.0
        %1540 = vmatpush1.msra.mxu0 0.0
        %1541 = vmatprep.subr.mxu0 0.0
        %1542 = vmatpush1.msra.mxu0 0.0
        %1543 = vmatprep.mubr.f32.mxu0 0.0
        %1544 = vmatmul.mubr.f32.gmra.mrb[0].mxu0 %v1477
        %v1545 = vpop.f32.mrb[0].mxu0
        %v1546 = vadd.f32 0.0, %v1545
        %v1547 = vpop.f32.mrb[0].mxu0
        %1548 = vdwg.mxu0
        %v1549 = vld [vmem:[%s11] sm:$0xff]
        %v1550 = vld [vmem:[%s11 + $0x8] sm:$0xff]
        %v1551 = vld [vmem:[%s11 + $0x10] sm:$0xff]
        %v1552 = vld [vmem:[%s11 + $0x18] sm:$0xff]
        %v1553 = vld [vmem:[%s12] sm:$0x1]
        %v1555 = vlaneseq
        %v1556 = vshrl.u32 %v1555, 7
        %v1557 = vsub.s32 0, %v1556
        %v1558 = vrot.slane %v1553, %v1557
        %v1561 = vsel %vm864, %v1394, 0
        %v1564 = vsel %vm864, %v1470, 0
        %v1567 = vsel %vm864, %v1546, 0
        %1569 = vmatprep.subr.mxu0 0.0
        %1570 = vmatpush1.msra.mxu0 %v1549
        %1571 = vmatprep.subr.mxu0 0.0
        %1572 = vmatpush1.msra.mxu0 %v1550
        %1573 = vmatprep.subr.mxu0 0.0
        %1574 = vmatpush1.msra.mxu0 %v1551
        %1575 = vmatprep.subr.mxu0 0.0
        %1576 = vmatpush1.msra.mxu0 %v1552
        %1577 = vmatprep.subr.mxu0 0.0
        %1578 = vmatpush1.msra.mxu0 0.0
        %1579 = vmatprep.subr.mxu0 0.0
        %1580 = vmatpush1.msra.mxu0 0.0
        %1581 = vmatprep.subr.mxu0 0.0
        %1582 = vmatpush1.msra.mxu0 0.0
        %1583 = vmatprep.subr.mxu0 0.0
        %1584 = vmatpush1.msra.mxu0 0.0
        %1585 = vmatprep.subr.mxu0 0.0
        %1586 = vmatpush1.msra.mxu0 0.0
        %1587 = vmatprep.subr.mxu0 0.0
        %1588 = vmatpush1.msra.mxu0 0.0
        %1589 = vmatprep.subr.mxu0 0.0
        %1590 = vmatpush1.msra.mxu0 0.0
        %1591 = vmatprep.subr.mxu0 0.0
        %1592 = vmatpush1.msra.mxu0 0.0
        %1593 = vmatprep.subr.mxu0 0.0
        %1594 = vmatpush1.msra.mxu0 0.0
        %1595 = vmatprep.subr.mxu0 0.0
        %1596 = vmatpush1.msra.mxu0 0.0
        %1597 = vmatprep.subr.mxu0 0.0
        %1598 = vmatpush1.msra.mxu0 0.0
        %1599 = vmatprep.subr.mxu0 0.0
        %1600 = vmatpush1.msra.mxu0 0.0
        %1601 = vmatprep.subr.mxu0 0.0
        %1602 = vmatpush1.msra.mxu0 0.0
        %1603 = vmatprep.subr.mxu0 0.0
        %1604 = vmatpush1.msra.mxu0 0.0
        %1605 = vmatprep.subr.mxu0 0.0
        %1606 = vmatpush1.msra.mxu0 0.0
        %1607 = vmatprep.subr.mxu0 0.0
        %1608 = vmatpush1.msra.mxu0 0.0
        %1609 = vmatprep.subr.mxu0 0.0
        %1610 = vmatpush1.msra.mxu0 0.0
        %1611 = vmatprep.subr.mxu0 0.0
        %1612 = vmatpush1.msra.mxu0 0.0
        %1613 = vmatprep.subr.mxu0 0.0
        %1614 = vmatpush1.msra.mxu0 0.0
        %1615 = vmatprep.subr.mxu0 0.0
        %1616 = vmatpush1.msra.mxu0 0.0
        %1617 = vmatprep.subr.mxu0 0.0
        %1618 = vmatpush1.msra.mxu0 0.0
        %1619 = vmatprep.subr.mxu0 0.0
        %1620 = vmatpush1.msra.mxu0 0.0
        %1621 = vmatprep.subr.mxu0 0.0
        %1622 = vmatpush1.msra.mxu0 0.0
        %1623 = vmatprep.subr.mxu0 0.0
        %1624 = vmatpush1.msra.mxu0 0.0
        %1625 = vmatprep.subr.mxu0 0.0
        %1626 = vmatpush1.msra.mxu0 0.0
        %1627 = vmatprep.subr.mxu0 0.0
        %1628 = vmatpush1.msra.mxu0 0.0
        %1629 = vmatprep.subr.mxu0 0.0
        %1630 = vmatpush1.msra.mxu0 0.0
        %1631 = vmatprep.subr.mxu0 0.0
        %1632 = vmatpush1.msra.mxu0 0.0
        %1633 = vmatprep.mubr.f32.mxu0 0.0
        %1634 = vmatmul.mubr.f32.gmra.mrb[0].mxu0 %v1561
        %v1635 = vpop.f32.mrb[0].mxu0
        %v1636 = vadd.f32 %v1558, %v1635
        %v1637 = vpop.f32.mrb[0].mxu0
        %1638 = vmatprep.mubr.f32.mxu0 0.0
        %1639 = vmatmul.mubr.f32.gmra.mrb[0].mxu0 %v1564
        %v1640 = vpop.f32.mrb[0].mxu0
        %v1641 = vadd.f32 %v1558, %v1640
        %v1642 = vpop.f32.mrb[0].mxu0
        %1643 = vmatprep.mubr.f32.mxu0 0.0
        %1644 = vmatmul.mubr.f32.gmra.mrb[0].mxu0 %v1567
        %v1645 = vpop.f32.mrb[0].mxu0
        %v1646 = vadd.f32 %v1558, %v1645
        %v1647 = vpop.f32.mrb[0].mxu0
        %1648 = vdwg.mxu0
        %v1649 = vld [vmem:[%s520] sm:$0xff]
        %v1650 = vld [vmem:[%s520 + $0x8] sm:$0xff]
        %v1651 = vld [vmem:[%s520 + $0x10] sm:$0xff]
        %1653 = vset.pattern.permute.xlu0 0
        %1654 = vperm.xlu0 %1653, %v1649
        %v1655 = vpop.permute.xlu0 %1654
        %1658 = vset.pattern.permute.xlu0 0
        %1659 = vperm.xlu0 %1658, %v1650
        %v1660 = vpop.permute.xlu0 %1659
        %1663 = vset.pattern.permute.xlu0 0
        %1664 = vperm.xlu0 %1663, %v1651
        %v1665 = vpop.permute.xlu0 %1664
        %v1667 = vmul.f32 %v1636, %v1655
        %v1668 = vmul.f32 %v1641, %v1660
        %v1669 = vmul.f32 %v1646, %v1665
        %1670 = vst [vmem:[%s494] sm:$0xff] %v1667
        %1671 = vst [vmem:[%s494 + $0x8] sm:$0xff] %v1668
        %1672 = vst [vmem:[%s494 + $0x10] sm:$0xff] %v1669
        %s1673 = sand.u32 %s333, 1
        %s1674 = scalar_lea.sflag [#allocation3], %s1673
        %s1675 = sand.u32 %s333, 1
        %s1676 = smul.addr %s1675, 24
        %s1677 = scalar_lea.vmem [#allocation2], %s1676
        // Predicated region
        $region73: #{tpu_custom_call.1} parent=71 // pred_check
          %p1678 = pneg %p343
        $region74: #{tpu_custom_call.1} parent=71 // pred_check_branch
          %1680 = sbr.rel (%p1678) target = $region76
        $region75: #{tpu_custom_call.1} parent=71 // pred_region
          %s1682 = ssub.s32 384, 384
          %1683 = vsyncadd %s1674, %s1682
          %s1684 = smul.addr %s27, 3
          %s1685 = smul.addr %s1684, 128
          %s1686 = scalar_lea.hbm %s13, %s1685
          %s1687 = sshll.u32 %s1677, 4
          %s1688 = int_to_ptr.vmem [resolvable:$true] %s1687
          %1693 = dma.vmem_to_hbm [thread:$0]  %s1688, 384, %s1686, %s1674, 128, 128, 8
        $region76: #{tpu_custom_call.1} parent=71 // pred_fallthru
          _
      $region72: #{tpu_custom_call.1} parent=5 // pred_fallthru
        _
      %p1694 = scmp.le.s32.totalorder 2, %s22
      // Predicated region
      $region77: #{tpu_custom_call.1} parent=5 // pred_check
        %p1695 = pneg %p1694
      $region78: #{tpu_custom_call.1} parent=5 // pred_check_branch
        %1697 = sbr.rel (%p1695) target = $region80
      $region79: #{tpu_custom_call.1} parent=5 // pred_region
        %s1698 = ssub.s32 %s22, 2
        // Predicated region
        $region81: #{tpu_custom_call.1} parent=79 // pred_check
          %p1699 = pneg %p349
        $region82: #{tpu_custom_call.1} parent=79 // pred_check_branch
          %1701 = sbr.rel (%p1699) target = $region84
        $region83: #{tpu_custom_call.1} parent=79 // pred_region
          %s1702 = sand.u32 %s334, 1
          %s1703 = scalar_lea.sflag [#allocation3], %s1702
          %s1704 = sand.u32 %s334, 1
          %s1705 = smul.addr %s1704, 24
          %s1706 = scalar_lea.vmem [#allocation2], %s1705
          %1707 = dma.done %s1703, 384
        $region84: #{tpu_custom_call.1} parent=79 // pred_fallthru
          _
      $region80: #{tpu_custom_call.1} parent=5 // pred_fallthru
        _
    $region6: #{tpu_custom_call.1} parent=1 // loop_footer
      %s26 = sadd.s32 1, %s22
    $region7: #{tpu_custom_call.1} parent=1 // loop_footer_branch
      %21 = sbr.rel target = $region3
    $region8: #{tpu_custom_call.1} parent=1 // loop_exit
      _
    %1708 = vsyncpa [#allocation3], 1
    %s1709 = scalar_lea.sflag [#allocation3], 1
    %1710 = vsyncpa %s1709, 1

</llo_original>
